<compile_context>
chip_gen: v5e
topology: v5e:2x2
jax: 0.10.0
libtpu: 0.0.40
codegen_flags: <defaults>
</compile_context>

<pallas_src>
import functools

import jax
import jax.numpy as jnp
from jax.experimental import pallas as pl
from jax.experimental.pallas import tpu as pltpu

# Module hyper-parameters (PyTorch defaults)
C_MSA = 64      # c_msa
C_OUT = 32      # num_outer_channel
F_OUT = 128     # num_output_channel
EPS = 1e-3      # module epsilon
LN_EPS = 1e-5   # torch LayerNorm default eps


@functools.lru_cache(maxsize=1)
def _vmem_limit_bytes():
    """~75% of physical VMEM (v5e/v6e -> ~96 MiB, v7x -> ~48 MiB)."""
    try:
        cap = pltpu.get_tpu_info().vmem_capacity_bytes
    except Exception:
        cap = 64 * 1024 * 1024
    return int(cap * 3 // 4)


# ---------------------------------------------------------------------------
# Kernel A: LayerNorm + fused masked left|right projection (lane-dense bf16)
#   msa2d [(S*R), M], mask2d [(S*R), 1], gamma/beta [1, M], wlr [M, 2C] (bf16)
#   output: lr [(S*R), 2C] bf16   (left = lr[:, :C], right = lr[:, C:])
# ---------------------------------------------------------------------------
def _proj_kernel(msa_ref, mask_ref, gamma_ref, beta_ref, wlr_ref, lr_ref):
    x = msa_ref[...]                                          # [TN, M] f32
    mu = jnp.mean(x, axis=-1, keepdims=True)
    xc = x - mu
    var = jnp.mean(xc * xc, axis=-1, keepdims=True)
    xn = xc * jax.lax.rsqrt(var + LN_EPS)
    xn = xn * gamma_ref[...] + beta_ref[...]                  # f32 LN
    proj = jnp.dot(xn.astype(jnp.bfloat16), wlr_ref[...],
                   preferred_element_type=jnp.float32)        # [TN, 2C] f32 acc
    lr_ref[...] = (mask_ref[...] * proj).astype(jnp.bfloat16)


def _project(msa2d, mask2d, gamma2d, beta2d, wlr, *, row_block):
    n, m = msa2d.shape
    c2 = wlr.shape[1]
    tn = min(row_block, n)
    return pl.pallas_call(
        _proj_kernel,
        out_shape=jax.ShapeDtypeStruct((n, c2), jnp.bfloat16),
        grid_spec=pltpu.PrefetchScalarGridSpec(
            num_scalar_prefetch=0,
            grid=(pl.cdiv(n, tn),),
            in_specs=[pl.BlockSpec((tn, m), lambda r: (r, 0)),
                      pl.BlockSpec((tn, 1), lambda r: (r, 0)),
                      pl.BlockSpec((1, m), lambda r: (0, 0)),
                      pl.BlockSpec((1, m), lambda r: (0, 0)),
                      pl.BlockSpec((m, c2), lambda r: (0, 0))],
            out_specs=pl.BlockSpec((tn, c2), lambda r: (r, 0)),
        ),
        compiler_params=pltpu.CompilerParams(
            dimension_semantics=("parallel",),
            vmem_limit_bytes=_vmem_limit_bytes()),
    )(msa2d, mask2d, gamma2d, beta2d, wlr)


# ---------------------------------------------------------------------------
# Kernel N: pair-mask normalizer  norm[i, j] = sum_a mask[a, i] * mask[a, j]
# ---------------------------------------------------------------------------
def _norm_kernel(maskT_ref, mask_ref, norm_ref):
    norm_ref[...] = jnp.dot(maskT_ref[...], mask_ref[...],
                            preferred_element_type=jnp.float32)


def _mask_norm(mask):
    s, r = mask.shape
    return pl.pallas_call(
        _norm_kernel,
        out_shape=jax.ShapeDtypeStruct((r, r), jnp.float32),
    )(mask.T, mask)


# ---------------------------------------------------------------------------
# Kernel C: fused per-left-residue outer-product + W contraction + epilogue
#   leftT [R, S, C] bf16     leftT[i, a, c]   = left[a, i, c]
#   rtt   [R, C*S] bf16      rtt[j, e*S + a]  = right[a, j, e]
#   wf    [C, C*F] bf16      wf[c, e*F + f]   = w[c, e, f]
#   norm3 [R, R, 1] f32, bias [1, F] f32  ->  out [R, R, F] f32
# ---------------------------------------------------------------------------
def _fused_pair_kernel(leftT_ref, rtt_ref, wf_ref, norm_ref, bias_ref,
                       out_ref, g_scr):
    s, c = leftT_ref.shape[1], leftT_ref.shape[2]
    f = out_ref.shape[2]

    # matmul 1 (MXU): G_i[a, (e,f)] = sum_c left[a, i, c] * W[c, (e,f)]
    g = jnp.dot(leftT_ref[0], wf_ref[...],
                preferred_element_type=jnp.float32)           # [S, C*F] f32

    # Re-layout [a, (e,f)] -> [(e,a), f] into bf16 VMEM scratch using static
    # lane slices + stores (no in-kernel reshape across tile boundaries).
    for e in range(c):
        g_scr[e * s:(e + 1) * s, :] = (
            g[:, e * f:(e + 1) * f].astype(jnp.bfloat16))

    # matmul 2 (MXU, K = C*S): act[j, f] = sum_{e,a} rtt[j,(e,a)] * G[(e,a),f]
    act = jnp.dot(rtt_ref[...], g_scr[...],
                  preferred_element_type=jnp.float32)         # [R, F] f32
    act = act + bias_ref[...]

    # Epilogue: mask-mean division (reciprocal on the EUP slot).
    denom = EPS + norm_ref[0]                                 # [R, 1] f32
    out_ref[0] = act * pl.reciprocal(denom, approx=True)


def _fused_pair(leftT, rtt, w_flat, norm3, bias2d):
    r, s, c = leftT.shape
    f = w_flat.shape[1] // c
    cs = c * s
    return pl.pallas_call(
        _fused_pair_kernel,
        out_shape=jax.ShapeDtypeStruct((r, r, f), jnp.float32),
        grid_spec=pltpu.PrefetchScalarGridSpec(
            num_scalar_prefetch=0,
            grid=(r,),
            in_specs=[pl.BlockSpec((1, s, c), lambda i: (i, 0, 0)),
                      pl.BlockSpec((r, cs), lambda i: (0, 0)),
                      pl.BlockSpec((c, c * f), lambda i: (0, 0)),
                      pl.BlockSpec((1, r, 1), lambda i: (i, 0, 0)),
                      pl.BlockSpec((1, f), lambda i: (0, 0))],
            out_specs=pl.BlockSpec((1, r, f), lambda i: (i, 0, 0)),
            scratch_shapes=[pltpu.VMEM((cs, f), jnp.bfloat16)],
        ),
        compiler_params=pltpu.CompilerParams(
            dimension_semantics=("parallel",),
            vmem_limit_bytes=_vmem_limit_bytes()),
    )(leftT, rtt, w_flat, norm3, bias2d)


# ---------------------------------------------------------------------------
# Wrapper == OuterProductMean.forward
# ---------------------------------------------------------------------------
def outer_product_mean(msa, mask, params, *, row_block=2048):
    s, r, m = msa.shape
    c = params["wl"].shape[1]
    f = params["w"].shape[-1]
    n = s * r

    # ---- XLA glue: layout only (reshapes / small-tensor permutes) ----
    msa2d = msa.reshape(n, m).astype(jnp.float32)
    mask_f = mask.astype(jnp.float32)
    mask2d = mask_f.reshape(n, 1)
    gamma2d = params["gamma"].reshape(1, m).astype(jnp.float32)
    beta2d = params["beta"].reshape(1, m).astype(jnp.float32)
    wlr = jnp.concatenate([params["wl"], params["wr"]], axis=1).astype(jnp.bfloat16)
    w_flat = params["w"].reshape(c, c * f).astype(jnp.bfloat16)
    bias2d = params["b"].reshape(1, f).astype(jnp.float32)

    # ---- Kernel A: LayerNorm + masked projections (bf16, lane-dense) ----
    lr = _project(msa2d, mask2d, gamma2d, beta2d, wlr, row_block=row_block)
    left3 = lr[:, :c].reshape(s, r, c)
    right3 = lr[:, c:].reshape(s, r, c)

    # ---- Kernel N: mask^T @ mask ----
    norm3 = _mask_norm(mask_f).reshape(r, r, 1)

    # ---- XLA glue: permutes of the SMALL [S,R,C] tensors only ----
    leftT = left3.transpose(1, 0, 2)                       # [R(i), S, C]
    rtt = right3.transpose(1, 2, 0).reshape(r, c * s)      # [R(j), (e, a)]

    # ---- Kernel C: fused pair contraction + bias + mask-mean division ----
    return _fused_pair(leftT, rtt, w_flat, norm3, bias2d)


# ---------------------------------------------------------------------------
# Pure-JAX reference (matches the torch module)
# ---------------------------------------------------------------------------
def _reference(msa, mask, p):
    mu = msa.mean(-1, keepdims=True)
    var = ((msa - mu) ** 2).mean(-1, keepdims=True)
    ln = (msa - mu) / jnp.sqrt(var + LN_EPS) * p["gamma"] + p["beta"]
    left = mask[..., None] * jnp.einsum("srm,mc->src", ln, p["wl"], precision="highest")
    right = mask[..., None] * jnp.einsum("srm,mc->src", ln, p["wr"], precision="highest")
    act = jnp.einsum("aic,aje,cef->ijf", left, right, p["w"], precision="highest") + p["b"]
    norm = jnp.einsum("ai,aj->ij", mask, mask)[..., None]
    return act / (EPS + norm)


if __name__ == "__main__":
    key = jax.random.PRNGKey(0)
    S, R = 8, 16
    ks = jax.random.split(key, 8)

    msa = jax.random.normal(ks[0], (S, R, C_MSA), jnp.float32)
    mask = (jax.random.uniform(ks[1], (S, R)) > 0.15).astype(jnp.float32)

    params = dict(
        gamma=(1.0 + 0.1 * jax.random.normal(ks[2], (C_MSA,))).astype(jnp.float32),
        beta=(0.1 * jax.random.normal(ks[3], (C_MSA,))).astype(jnp.float32),
        wl=(jax.random.normal(ks[4], (C_MSA, C_OUT)) / jnp.sqrt(C_MSA)).astype(jnp.float32),
        wr=(jax.random.normal(ks[5], (C_MSA, C_OUT)) / jnp.sqrt(C_MSA)).astype(jnp.float32),
        w=(0.05 * jax.random.normal(ks[6], (C_OUT, C_OUT, F_OUT))).astype(jnp.float32),
        b=(0.1 * jax.random.normal(ks[7], (F_OUT,))).astype(jnp.float32),
    )

    out = jax.block_until_ready(jax.jit(outer_product_mean)(msa, mask, params))
    assert out.shape == (R, R, F_OUT)

    ref = _reference(msa, mask, params)
    max_err = float(jnp.max(jnp.abs(out - ref)))
    assert jnp.allclose(out, ref, rtol=2e-2, atol=2e-2), f"max abs err {max_err}"

    print("KERNEL_OK")
</pallas_src>

<mosaic_0001>
module attributes {stable_mosaic.version = 11 : i64} {
  func.func @_proj_kernel(%arg0: i32, %arg1: memref<128x64xf32, #tpu.memory_space<vmem>>, %arg2: memref<128x1xf32, #tpu.memory_space<vmem>>, %arg3: memref<1x64xf32, #tpu.memory_space<vmem>>, %arg4: memref<1x64xf32, #tpu.memory_space<vmem>>, %arg5: memref<64x64xbf16, #tpu.memory_space<vmem>>, %arg6: memref<128x64xbf16, #tpu.memory_space<vmem>>) attributes {dimension_semantics = [#tpu.dimension_semantics<parallel>], iteration_bounds = array<i64: 1>, scalar_prefetch = 0 : i64, scratch_operands = 0 : i64, tpu.core_type = #tpu.core_type<tc>, window_params = [{transform_indices = @transform_0, window_bounds = array<i64: 128, 64>}, {transform_indices = @transform_1, window_bounds = array<i64: 128, 1>}, {pipeline_mode = #tpu.pipeline_mode<synchronous>, transform_indices = @transform_2, window_bounds = array<i64: 1, 64>}, {pipeline_mode = #tpu.pipeline_mode<synchronous>, transform_indices = @transform_3, window_bounds = array<i64: 1, 64>}, {pipeline_mode = #tpu.pipeline_mode<synchronous>, transform_indices = @transform_4, window_bounds = array<i64: 64, 64>}, {transform_indices = @transform_5, window_bounds = array<i64: 128, 64>}]} {
    %c0 = arith.constant 0 : index
    %c0_0 = arith.constant 0 : index
    %0 = vector.load %arg1[%c0, %c0_0] : memref<128x64xf32, #tpu.memory_space<vmem>>, vector<128x64xf32>
    %cst = arith.constant dense<0.000000e+00> : vector<128xf32>
    %1 = vector.multi_reduction <add>, %0, %cst [1] : vector<128x64xf32> to vector<128xf32>
    %2 = vector.shape_cast %1 : vector<128xf32> to vector<128x1xf32>
    %cst_1 = arith.constant 6.400000e+01 : f32
    %3 = vector.broadcast %cst_1 : f32 to vector<128x1xf32>
    %4 = arith.divf %2, %3 : vector<128x1xf32>
    %5 = vector.broadcast %4 : vector<128x1xf32> to vector<128x64xf32>
    %6 = arith.subf %0, %5 : vector<128x64xf32>
    %7 = arith.mulf %6, %6 : vector<128x64xf32>
    %cst_2 = arith.constant dense<0.000000e+00> : vector<128xf32>
    %8 = vector.multi_reduction <add>, %7, %cst_2 [1] : vector<128x64xf32> to vector<128xf32>
    %9 = vector.shape_cast %8 : vector<128xf32> to vector<128x1xf32>
    %cst_3 = arith.constant 6.400000e+01 : f32
    %10 = vector.broadcast %cst_3 : f32 to vector<128x1xf32>
    %11 = arith.divf %9, %10 : vector<128x1xf32>
    %cst_4 = arith.constant 9.99999974E-6 : f32
    %12 = vector.broadcast %cst_4 : f32 to vector<128x1xf32>
    %13 = arith.addf %11, %12 : vector<128x1xf32>
    %14 = math.rsqrt %13 : vector<128x1xf32>
    %15 = vector.broadcast %14 : vector<128x1xf32> to vector<128x64xf32>
    %16 = arith.mulf %6, %15 : vector<128x64xf32>
    %c0_5 = arith.constant 0 : index
    %c0_6 = arith.constant 0 : index
    %17 = vector.load %arg3[%c0_5, %c0_6] : memref<1x64xf32, #tpu.memory_space<vmem>>, vector<1x64xf32>
    %18 = vector.broadcast %17 : vector<1x64xf32> to vector<128x64xf32>
    %19 = arith.mulf %16, %18 : vector<128x64xf32>
    %c0_7 = arith.constant 0 : index
    %c0_8 = arith.constant 0 : index
    %20 = vector.load %arg4[%c0_7, %c0_8] : memref<1x64xf32, #tpu.memory_space<vmem>>, vector<1x64xf32>
    %21 = vector.broadcast %20 : vector<1x64xf32> to vector<128x64xf32>
    %22 = arith.addf %19, %21 : vector<128x64xf32>
    %23 = arith.truncf %22 : vector<128x64xf32> to vector<128x64xbf16>
    %c0_9 = arith.constant 0 : index
    %c0_10 = arith.constant 0 : index
    %24 = vector.load %arg5[%c0_9, %c0_10] : memref<64x64xbf16, #tpu.memory_space<vmem>>, vector<64x64xbf16>
    %cst_11 = arith.constant dense<0.000000e+00> : vector<128x64xf32>
    %25 = tpu.matmul %23, %24, %cst_11 {dimension_numbers = #tpu.dot_dimension_numbers<[1], [0], [0], [1], [0, 0, 1, 1], [], []>} : vector<128x64xbf16>, vector<64x64xbf16>, vector<128x64xf32> -> vector<128x64xf32>
    %c0_12 = arith.constant 0 : index
    %c0_13 = arith.constant 0 : index
    %26 = vector.load %arg2[%c0_12, %c0_13] : memref<128x1xf32, #tpu.memory_space<vmem>>, vector<128x1xf32>
    %27 = vector.broadcast %26 : vector<128x1xf32> to vector<128x64xf32>
    %28 = arith.mulf %27, %25 : vector<128x64xf32>
    %29 = arith.truncf %28 : vector<128x64xf32> to vector<128x64xbf16>
    %c0_14 = arith.constant 0 : index
    %c0_15 = arith.constant 0 : index
    %30 = vector.load %arg6[%c0_14, %c0_15] : memref<128x64xbf16, #tpu.memory_space<vmem>>, vector<128x64xbf16>
    tpu.vector_store %arg6[%c0_14, %c0_15], %29 {strides = array<i32>} : memref<128x64xbf16, #tpu.memory_space<vmem>>, vector<128x64xbf16>,
    return
  }
  func.func @transform_0(%arg0: i32) -> (i32, i32) {
    %c0_i32 = arith.constant 0 : i32
    %c0_i32_0 = arith.constant 0 : i32
    return %arg0, %c0_i32 : i32, i32
  }
  func.func @transform_1(%arg0: i32) -> (i32, i32) {
    %c0_i32 = arith.constant 0 : i32
    %c0_i32_0 = arith.constant 0 : i32
    return %arg0, %c0_i32 : i32, i32
  }
  func.func @transform_2(%arg0: i32) -> (i32, i32) {
    %c0_i32 = arith.constant 0 : i32
    %c0_i32_0 = arith.constant 0 : i32
    %c0_i32_1 = arith.constant 0 : i32
    return %c0_i32, %c0_i32_0 : i32, i32
  }
  func.func @transform_3(%arg0: i32) -> (i32, i32) {
    %c0_i32 = arith.constant 0 : i32
    %c0_i32_0 = arith.constant 0 : i32
    %c0_i32_1 = arith.constant 0 : i32
    return %c0_i32, %c0_i32_0 : i32, i32
  }
  func.func @transform_4(%arg0: i32) -> (i32, i32) {
    %c0_i32 = arith.constant 0 : i32
    %c0_i32_0 = arith.constant 0 : i32
    %c0_i32_1 = arith.constant 0 : i32
    return %c0_i32, %c0_i32_0 : i32, i32
  }
  func.func @transform_5(%arg0: i32) -> (i32, i32) {
    %c0_i32 = arith.constant 0 : i32
    %c0_i32_0 = arith.constant 0 : i32
    return %arg0, %c0_i32 : i32, i32
  }
}

module attributes {stable_mosaic.version = 11 : i64} {
  func.func @_fused_pair_kernel(%arg0: i32, %arg1: memref<1x8x32xbf16, #tpu.memory_space<vmem>>, %arg2: memref<16x256xbf16, #tpu.memory_space<vmem>>, %arg3: memref<32x4096xbf16, #tpu.memory_space<vmem>>, %arg4: memref<1x16x1xf32, #tpu.memory_space<vmem>>, %arg5: memref<1x128xf32, #tpu.memory_space<vmem>>, %arg6: memref<1x16x128xf32, #tpu.memory_space<vmem>>, %arg7: memref<256x128xbf16, #tpu.memory_space<vmem>>) attributes {dimension_semantics = [#tpu.dimension_semantics<parallel>], iteration_bounds = array<i64: 16>, scalar_prefetch = 0 : i64, scratch_operands = 1 : i64, tpu.core_type = #tpu.core_type<tc>, window_params = [{transform_indices = @transform_0, window_bounds = array<i64: 1, 8, 32>}, {pipeline_mode = #tpu.pipeline_mode<synchronous>, transform_indices = @transform_1, window_bounds = array<i64: 16, 256>}, {pipeline_mode = #tpu.pipeline_mode<synchronous>, transform_indices = @transform_2, window_bounds = array<i64: 32, 4096>}, {transform_indices = @transform_3, window_bounds = array<i64: 1, 16, 1>}, {pipeline_mode = #tpu.pipeline_mode<synchronous>, transform_indices = @transform_4, window_bounds = array<i64: 1, 128>}, {transform_indices = @transform_5, window_bounds = array<i64: 1, 16, 128>}]} {
    %c0 = arith.constant 0 : index
    %c0_0 = arith.constant 0 : index
    %c0_1 = arith.constant 0 : index
    %0 = vector.load %arg1[%c0, %c0_0, %c0_1] : memref<1x8x32xbf16, #tpu.memory_space<vmem>>, vector<1x8x32xbf16>
    %1 = vector.shape_cast %0 : vector<1x8x32xbf16> to vector<8x32xbf16>
    %c0_2 = arith.constant 0 : index
    %c0_3 = arith.constant 0 : index
    %2 = vector.load %arg3[%c0_2, %c0_3] : memref<32x4096xbf16, #tpu.memory_space<vmem>>, vector<32x4096xbf16>
    %cst = arith.constant dense<0.000000e+00> : vector<8x4096xf32>
    %3 = tpu.matmul %1, %2, %cst {dimension_numbers = #tpu.dot_dimension_numbers<[1], [0], [0], [1], [0, 0, 1, 1], [], []>} : vector<8x32xbf16>, vector<32x4096xbf16>, vector<8x4096xf32> -> vector<8x4096xf32>
    %4 = vector.extract_strided_slice %3 {offsets = [0, 0], sizes = [8, 128], strides = [1, 1]} : vector<8x4096xf32> to vector<8x128xf32>
    %5 = arith.truncf %4 : vector<8x128xf32> to vector<8x128xbf16>
    %c0_4 = arith.constant 0 : index
    %c0_5 = arith.constant 0 : index
    %6 = vector.load %arg7[%c0_4, %c0_5] : memref<256x128xbf16, #tpu.memory_space<vmem>>, vector<8x128xbf16>
    tpu.vector_store %arg7[%c0_4, %c0_5], %5 {strides = array<i32>} : memref<256x128xbf16, #tpu.memory_space<vmem>>, vector<8x128xbf16>,
    %7 = vector.extract_strided_slice %3 {offsets = [0, 128], sizes = [8, 128], strides = [1, 1]} : vector<8x4096xf32> to vector<8x128xf32>
    %8 = arith.truncf %7 : vector<8x128xf32> to vector<8x128xbf16>
    %c8 = arith.constant 8 : index
    %c0_6 = arith.constant 0 : index
    %9 = vector.load %arg7[%c8, %c0_6] : memref<256x128xbf16, #tpu.memory_space<vmem>>, vector<8x128xbf16>
    tpu.vector_store %arg7[%c8, %c0_6], %8 {strides = array<i32>} : memref<256x128xbf16, #tpu.memory_space<vmem>>, vector<8x128xbf16>,
    %10 = vector.extract_strided_slice %3 {offsets = [0, 256], sizes = [8, 128], strides = [1, 1]} : vector<8x4096xf32> to vector<8x128xf32>
    %11 = arith.truncf %10 : vector<8x128xf32> to vector<8x128xbf16>
    %c16 = arith.constant 16 : index
    %c0_7 = arith.constant 0 : index
    %12 = vector.load %arg7[%c16, %c0_7] : memref<256x128xbf16, #tpu.memory_space<vmem>>, vector<8x128xbf16>
    tpu.vector_store %arg7[%c16, %c0_7], %11 {strides = array<i32>} : memref<256x128xbf16, #tpu.memory_space<vmem>>, vector<8x128xbf16>,
    %13 = vector.extract_strided_slice %3 {offsets = [0, 384], sizes = [8, 128], strides = [1, 1]} : vector<8x4096xf32> to vector<8x128xf32>
    %14 = arith.truncf %13 : vector<8x128xf32> to vector<8x128xbf16>
    %c24 = arith.constant 24 : index
    %c0_8 = arith.constant 0 : index
    %15 = vector.load %arg7[%c24, %c0_8] : memref<256x128xbf16, #tpu.memory_space<vmem>>, vector<8x128xbf16>
    tpu.vector_store %arg7[%c24, %c0_8], %14 {strides = array<i32>} : memref<256x128xbf16, #tpu.memory_space<vmem>>, vector<8x128xbf16>,
    %16 = vector.extract_strided_slice %3 {offsets = [0, 512], sizes = [8, 128], strides = [1, 1]} : vector<8x4096xf32> to vector<8x128xf32>
    %17 = arith.truncf %16 : vector<8x128xf32> to vector<8x128xbf16>
    %c32 = arith.constant 32 : index
    %c0_9 = arith.constant 0 : index
    %18 = vector.load %arg7[%c32, %c0_9] : memref<256x128xbf16, #tpu.memory_space<vmem>>, vector<8x128xbf16>
    tpu.vector_store %arg7[%c32, %c0_9], %17 {strides = array<i32>} : memref<256x128xbf16, #tpu.memory_space<vmem>>, vector<8x128xbf16>,
    %19 = vector.extract_strided_slice %3 {offsets = [0, 640], sizes = [8, 128], strides = [1, 1]} : vector<8x4096xf32> to vector<8x128xf32>
    %20 = arith.truncf %19 : vector<8x128xf32> to vector<8x128xbf16>
    %c40 = arith.constant 40 : index
    %c0_10 = arith.constant 0 : index
    %21 = vector.load %arg7[%c40, %c0_10] : memref<256x128xbf16, #tpu.memory_space<vmem>>, vector<8x128xbf16>
    tpu.vector_store %arg7[%c40, %c0_10], %20 {strides = array<i32>} : memref<256x128xbf16, #tpu.memory_space<vmem>>, vector<8x128xbf16>,
    %22 = vector.extract_strided_slice %3 {offsets = [0, 768], sizes = [8, 128], strides = [1, 1]} : vector<8x4096xf32> to vector<8x128xf32>
    %23 = arith.truncf %22 : vector<8x128xf32> to vector<8x128xbf16>
    %c48 = arith.constant 48 : index
    %c0_11 = arith.constant 0 : index
    %24 = vector.load %arg7[%c48, %c0_11] : memref<256x128xbf16, #tpu.memory_space<vmem>>, vector<8x128xbf16>
    tpu.vector_store %arg7[%c48, %c0_11], %23 {strides = array<i32>} : memref<256x128xbf16, #tpu.memory_space<vmem>>, vector<8x128xbf16>,
    %25 = vector.extract_strided_slice %3 {offsets = [0, 896], sizes = [8, 128], strides = [1, 1]} : vector<8x4096xf32> to vector<8x128xf32>
    %26 = arith.truncf %25 : vector<8x128xf32> to vector<8x128xbf16>
    %c56 = arith.constant 56 : index
    %c0_12 = arith.constant 0 : index
    %27 = vector.load %arg7[%c56, %c0_12] : memref<256x128xbf16, #tpu.memory_space<vmem>>, vector<8x128xbf16>
    tpu.vector_store %arg7[%c56, %c0_12], %26 {strides = array<i32>} : memref<256x128xbf16, #tpu.memory_space<vmem>>, vector<8x128xbf16>,
    %28 = vector.extract_strided_slice %3 {offsets = [0, 1024], sizes = [8, 128], strides = [1, 1]} : vector<8x4096xf32> to vector<8x128xf32>
    %29 = arith.truncf %28 : vector<8x128xf32> to vector<8x128xbf16>
    %c64 = arith.constant 64 : index
    %c0_13 = arith.constant 0 : index
    %30 = vector.load %arg7[%c64, %c0_13] : memref<256x128xbf16, #tpu.memory_space<vmem>>, vector<8x128xbf16>
    tpu.vector_store %arg7[%c64, %c0_13], %29 {strides = array<i32>} : memref<256x128xbf16, #tpu.memory_space<vmem>>, vector<8x128xbf16>,
    %31 = vector.extract_strided_slice %3 {offsets = [0, 1152], sizes = [8, 128], strides = [1, 1]} : vector<8x4096xf32> to vector<8x128xf32>
    %32 = arith.truncf %31 : vector<8x128xf32> to vector<8x128xbf16>
    %c72 = arith.constant 72 : index
    %c0_14 = arith.constant 0 : index
    %33 = vector.load %arg7[%c72, %c0_14] : memref<256x128xbf16, #tpu.memory_space<vmem>>, vector<8x128xbf16>
    tpu.vector_store %arg7[%c72, %c0_14], %32 {strides = array<i32>} : memref<256x128xbf16, #tpu.memory_space<vmem>>, vector<8x128xbf16>,
    %34 = vector.extract_strided_slice %3 {offsets = [0, 1280], sizes = [8, 128], strides = [1, 1]} : vector<8x4096xf32> to vector<8x128xf32>
    %35 = arith.truncf %34 : vector<8x128xf32> to vector<8x128xbf16>
    %c80 = arith.constant 80 : index
    %c0_15 = arith.constant 0 : index
    %36 = vector.load %arg7[%c80, %c0_15] : memref<256x128xbf16, #tpu.memory_space<vmem>>, vector<8x128xbf16>
    tpu.vector_store %arg7[%c80, %c0_15], %35 {strides = array<i32>} : memref<256x128xbf16, #tpu.memory_space<vmem>>, vector<8x128xbf16>,
    %37 = vector.extract_strided_slice %3 {offsets = [0, 1408], sizes = [8, 128], strides = [1, 1]} : vector<8x4096xf32> to vector<8x128xf32>
    %38 = arith.truncf %37 : vector<8x128xf32> to vector<8x128xbf16>
    %c88 = arith.constant 88 : index
    %c0_16 = arith.constant 0 : index
    %39 = vector.load %arg7[%c88, %c0_16] : memref<256x128xbf16, #tpu.memory_space<vmem>>, vector<8x128xbf16>
    tpu.vector_store %arg7[%c88, %c0_16], %38 {strides = array<i32>} : memref<256x128xbf16, #tpu.memory_space<vmem>>, vector<8x128xbf16>,
    %40 = vector.extract_strided_slice %3 {offsets = [0, 1536], sizes = [8, 128], strides = [1, 1]} : vector<8x4096xf32> to vector<8x128xf32>
    %41 = arith.truncf %40 : vector<8x128xf32> to vector<8x128xbf16>
    %c96 = arith.constant 96 : index
    %c0_17 = arith.constant 0 : index
    %42 = vector.load %arg7[%c96, %c0_17] : memref<256x128xbf16, #tpu.memory_space<vmem>>, vector<8x128xbf16>
    tpu.vector_store %arg7[%c96, %c0_17], %41 {strides = array<i32>} : memref<256x128xbf16, #tpu.memory_space<vmem>>, vector<8x128xbf16>,
    %43 = vector.extract_strided_slice %3 {offsets = [0, 1664], sizes = [8, 128], strides = [1, 1]} : vector<8x4096xf32> to vector<8x128xf32>
    %44 = arith.truncf %43 : vector<8x128xf32> to vector<8x128xbf16>
    %c104 = arith.constant 104 : index
    %c0_18 = arith.constant 0 : index
    %45 = vector.load %arg7[%c104, %c0_18] : memref<256x128xbf16, #tpu.memory_space<vmem>>, vector<8x128xbf16>
    tpu.vector_store %arg7[%c104, %c0_18], %44 {strides = array<i32>} : memref<256x128xbf16, #tpu.memory_space<vmem>>, vector<8x128xbf16>,
    %46 = vector.extract_strided_slice %3 {offsets = [0, 1792], sizes = [8, 128], strides = [1, 1]} : vector<8x4096xf32> to vector<8x128xf32>
    %47 = arith.truncf %46 : vector<8x128xf32> to vector<8x128xbf16>
    %c112 = arith.constant 112 : index
    %c0_19 = arith.constant 0 : index
    %48 = vector.load %arg7[%c112, %c0_19] : memref<256x128xbf16, #tpu.memory_space<vmem>>, vector<8x128xbf16>
    tpu.vector_store %arg7[%c112, %c0_19], %47 {strides = array<i32>} : memref<256x128xbf16, #tpu.memory_space<vmem>>, vector<8x128xbf16>,
    %49 = vector.extract_strided_slice %3 {offsets = [0, 1920], sizes = [8, 128], strides = [1, 1]} : vector<8x4096xf32> to vector<8x128xf32>
    %50 = arith.truncf %49 : vector<8x128xf32> to vector<8x128xbf16>
    %c120 = arith.constant 120 : index
    %c0_20 = arith.constant 0 : index
    %51 = vector.load %arg7[%c120, %c0_20] : memref<256x128xbf16, #tpu.memory_space<vmem>>, vector<8x128xbf16>
    tpu.vector_store %arg7[%c120, %c0_20], %50 {strides = array<i32>} : memref<256x128xbf16, #tpu.memory_space<vmem>>, vector<8x128xbf16>,
    %52 = vector.extract_strided_slice %3 {offsets = [0, 2048], sizes = [8, 128], strides = [1, 1]} : vector<8x4096xf32> to vector<8x128xf32>
    %53 = arith.truncf %52 : vector<8x128xf32> to vector<8x128xbf16>
    %c128 = arith.constant 128 : index
    %c0_21 = arith.constant 0 : index
    %54 = vector.load %arg7[%c128, %c0_21] : memref<256x128xbf16, #tpu.memory_space<vmem>>, vector<8x128xbf16>
    tpu.vector_store %arg7[%c128, %c0_21], %53 {strides = array<i32>} : memref<256x128xbf16, #tpu.memory_space<vmem>>, vector<8x128xbf16>,
    %55 = vector.extract_strided_slice %3 {offsets = [0, 2176], sizes = [8, 128], strides = [1, 1]} : vector<8x4096xf32> to vector<8x128xf32>
    %56 = arith.truncf %55 : vector<8x128xf32> to vector<8x128xbf16>
    %c136 = arith.constant 136 : index
    %c0_22 = arith.constant 0 : index
    %57 = vector.load %arg7[%c136, %c0_22] : memref<256x128xbf16, #tpu.memory_space<vmem>>, vector<8x128xbf16>
    tpu.vector_store %arg7[%c136, %c0_22], %56 {strides = array<i32>} : memref<256x128xbf16, #tpu.memory_space<vmem>>, vector<8x128xbf16>,
    %58 = vector.extract_strided_slice %3 {offsets = [0, 2304], sizes = [8, 128], strides = [1, 1]} : vector<8x4096xf32> to vector<8x128xf32>
    %59 = arith.truncf %58 : vector<8x128xf32> to vector<8x128xbf16>
    %c144 = arith.constant 144 : index
    %c0_23 = arith.constant 0 : index
    %60 = vector.load %arg7[%c144, %c0_23] : memref<256x128xbf16, #tpu.memory_space<vmem>>, vector<8x128xbf16>
    tpu.vector_store %arg7[%c144, %c0_23], %59 {strides = array<i32>} : memref<256x128xbf16, #tpu.memory_space<vmem>>, vector<8x128xbf16>,
    %61 = vector.extract_strided_slice %3 {offsets = [0, 2432], sizes = [8, 128], strides = [1, 1]} : vector<8x4096xf32> to vector<8x128xf32>
    %62 = arith.truncf %61 : vector<8x128xf32> to vector<8x128xbf16>
    %c152 = arith.constant 152 : index
    %c0_24 = arith.constant 0 : index
    %63 = vector.load %arg7[%c152, %c0_24] : memref<256x128xbf16, #tpu.memory_space<vmem>>, vector<8x128xbf16>
    tpu.vector_store %arg7[%c152, %c0_24], %62 {strides = array<i32>} : memref<256x128xbf16, #tpu.memory_space<vmem>>, vector<8x128xbf16>,
    %64 = vector.extract_strided_slice %3 {offsets = [0, 2560], sizes = [8, 128], strides = [1, 1]} : vector<8x4096xf32> to vector<8x128xf32>
    %65 = arith.truncf %64 : vector<8x128xf32> to vector<8x128xbf16>
    %c160 = arith.constant 160 : index
    %c0_25 = arith.constant 0 : index
    %66 = vector.load %arg7[%c160, %c0_25] : memref<256x128xbf16, #tpu.memory_space<vmem>>, vector<8x128xbf16>
    tpu.vector_store %arg7[%c160, %c0_25], %65 {strides = array<i32>} : memref<256x128xbf16, #tpu.memory_space<vmem>>, vector<8x128xbf16>,
    %67 = vector.extract_strided_slice %3 {offsets = [0, 2688], sizes = [8, 128], strides = [1, 1]} : vector<8x4096xf32> to vector<8x128xf32>
    %68 = arith.truncf %67 : vector<8x128xf32> to vector<8x128xbf16>
    %c168 = arith.constant 168 : index
    %c0_26 = arith.constant 0 : index
    %69 = vector.load %arg7[%c168, %c0_26] : memref<256x128xbf16, #tpu.memory_space<vmem>>, vector<8x128xbf16>
    tpu.vector_store %arg7[%c168, %c0_26], %68 {strides = array<i32>} : memref<256x128xbf16, #tpu.memory_space<vmem>>, vector<8x128xbf16>,
    %70 = vector.extract_strided_slice %3 {offsets = [0, 2816], sizes = [8, 128], strides = [1, 1]} : vector<8x4096xf32> to vector<8x128xf32>
    %71 = arith.truncf %70 : vector<8x128xf32> to vector<8x128xbf16>
    %c176 = arith.constant 176 : index
    %c0_27 = arith.constant 0 : index
    %72 = vector.load %arg7[%c176, %c0_27] : memref<256x128xbf16, #tpu.memory_space<vmem>>, vector<8x128xbf16>
    tpu.vector_store %arg7[%c176, %c0_27], %71 {strides = array<i32>} : memref<256x128xbf16, #tpu.memory_space<vmem>>, vector<8x128xbf16>,
    %73 = vector.extract_strided_slice %3 {offsets = [0, 2944], sizes = [8, 128], strides = [1, 1]} : vector<8x4096xf32> to vector<8x128xf32>
    %74 = arith.truncf %73 : vector<8x128xf32> to vector<8x128xbf16>
    %c184 = arith.constant 184 : index
    %c0_28 = arith.constant 0 : index
    %75 = vector.load %arg7[%c184, %c0_28] : memref<256x128xbf16, #tpu.memory_space<vmem>>, vector<8x128xbf16>
    tpu.vector_store %arg7[%c184, %c0_28], %74 {strides = array<i32>} : memref<256x128xbf16, #tpu.memory_space<vmem>>, vector<8x128xbf16>,
    %76 = vector.extract_strided_slice %3 {offsets = [0, 3072], sizes = [8, 128], strides = [1, 1]} : vector<8x4096xf32> to vector<8x128xf32>
    %77 = arith.truncf %76 : vector<8x128xf32> to vector<8x128xbf16>
    %c192 = arith.constant 192 : index
    %c0_29 = arith.constant 0 : index
    %78 = vector.load %arg7[%c192, %c0_29] : memref<256x128xbf16, #tpu.memory_space<vmem>>, vector<8x128xbf16>
    tpu.vector_store %arg7[%c192, %c0_29], %77 {strides = array<i32>} : memref<256x128xbf16, #tpu.memory_space<vmem>>, vector<8x128xbf16>,
    %79 = vector.extract_strided_slice %3 {offsets = [0, 3200], sizes = [8, 128], strides = [1, 1]} : vector<8x4096xf32> to vector<8x128xf32>
    %80 = arith.truncf %79 : vector<8x128xf32> to vector<8x128xbf16>
    %c200 = arith.constant 200 : index
    %c0_30 = arith.constant 0 : index
    %81 = vector.load %arg7[%c200, %c0_30] : memref<256x128xbf16, #tpu.memory_space<vmem>>, vector<8x128xbf16>
    tpu.vector_store %arg7[%c200, %c0_30], %80 {strides = array<i32>} : memref<256x128xbf16, #tpu.memory_space<vmem>>, vector<8x128xbf16>,
    %82 = vector.extract_strided_slice %3 {offsets = [0, 3328], sizes = [8, 128], strides = [1, 1]} : vector<8x4096xf32> to vector<8x128xf32>
    %83 = arith.truncf %82 : vector<8x128xf32> to vector<8x128xbf16>
    %c208 = arith.constant 208 : index
    %c0_31 = arith.constant 0 : index
    %84 = vector.load %arg7[%c208, %c0_31] : memref<256x128xbf16, #tpu.memory_space<vmem>>, vector<8x128xbf16>
    tpu.vector_store %arg7[%c208, %c0_31], %83 {strides = array<i32>} : memref<256x128xbf16, #tpu.memory_space<vmem>>, vector<8x128xbf16>,
    %85 = vector.extract_strided_slice %3 {offsets = [0, 3456], sizes = [8, 128], strides = [1, 1]} : vector<8x4096xf32> to vector<8x128xf32>
    %86 = arith.truncf %85 : vector<8x128xf32> to vector<8x128xbf16>
    %c216 = arith.constant 216 : index
    %c0_32 = arith.constant 0 : index
    %87 = vector.load %arg7[%c216, %c0_32] : memref<256x128xbf16, #tpu.memory_space<vmem>>, vector<8x128xbf16>
    tpu.vector_store %arg7[%c216, %c0_32], %86 {strides = array<i32>} : memref<256x128xbf16, #tpu.memory_space<vmem>>, vector<8x128xbf16>,
    %88 = vector.extract_strided_slice %3 {offsets = [0, 3584], sizes = [8, 128], strides = [1, 1]} : vector<8x4096xf32> to vector<8x128xf32>
    %89 = arith.truncf %88 : vector<8x128xf32> to vector<8x128xbf16>
    %c224 = arith.constant 224 : index
    %c0_33 = arith.constant 0 : index
    %90 = vector.load %arg7[%c224, %c0_33] : memref<256x128xbf16, #tpu.memory_space<vmem>>, vector<8x128xbf16>
    tpu.vector_store %arg7[%c224, %c0_33], %89 {strides = array<i32>} : memref<256x128xbf16, #tpu.memory_space<vmem>>, vector<8x128xbf16>,
    %91 = vector.extract_strided_slice %3 {offsets = [0, 3712], sizes = [8, 128], strides = [1, 1]} : vector<8x4096xf32> to vector<8x128xf32>
    %92 = arith.truncf %91 : vector<8x128xf32> to vector<8x128xbf16>
    %c232 = arith.constant 232 : index
    %c0_34 = arith.constant 0 : index
    %93 = vector.load %arg7[%c232, %c0_34] : memref<256x128xbf16, #tpu.memory_space<vmem>>, vector<8x128xbf16>
    tpu.vector_store %arg7[%c232, %c0_34], %92 {strides = array<i32>} : memref<256x128xbf16, #tpu.memory_space<vmem>>, vector<8x128xbf16>,
    %94 = vector.extract_strided_slice %3 {offsets = [0, 3840], sizes = [8, 128], strides = [1, 1]} : vector<8x4096xf32> to vector<8x128xf32>
    %95 = arith.truncf %94 : vector<8x128xf32> to vector<8x128xbf16>
    %c240 = arith.constant 240 : index
    %c0_35 = arith.constant 0 : index
    %96 = vector.load %arg7[%c240, %c0_35] : memref<256x128xbf16, #tpu.memory_space<vmem>>, vector<8x128xbf16>
    tpu.vector_store %arg7[%c240, %c0_35], %95 {strides = array<i32>} : memref<256x128xbf16, #tpu.memory_space<vmem>>, vector<8x128xbf16>,
    %97 = vector.extract_strided_slice %3 {offsets = [0, 3968], sizes = [8, 128], strides = [1, 1]} : vector<8x4096xf32> to vector<8x128xf32>
    %98 = arith.truncf %97 : vector<8x128xf32> to vector<8x128xbf16>
    %c248 = arith.constant 248 : index
    %c0_36 = arith.constant 0 : index
    %99 = vector.load %arg7[%c248, %c0_36] : memref<256x128xbf16, #tpu.memory_space<vmem>>, vector<8x128xbf16>
    tpu.vector_store %arg7[%c248, %c0_36], %98 {strides = array<i32>} : memref<256x128xbf16, #tpu.memory_space<vmem>>, vector<8x128xbf16>,
    %c0_37 = arith.constant 0 : index
    %c0_38 = arith.constant 0 : index
    %100 = vector.load %arg2[%c0_37, %c0_38] : memref<16x256xbf16, #tpu.memory_space<vmem>>, vector<16x256xbf16>
    %c0_39 = arith.constant 0 : index
    %c0_40 = arith.constant 0 : index
    %101 = vector.load %arg7[%c0_39, %c0_40] : memref<256x128xbf16, #tpu.memory_space<vmem>>, vector<256x128xbf16>
    %cst_41 = arith.constant dense<0.000000e+00> : vector<16x128xf32>
    %102 = tpu.matmul %100, %101, %cst_41 {dimension_numbers = #tpu.dot_dimension_numbers<[1], [0], [0], [1], [0, 0, 1, 1], [], []>} : vector<16x256xbf16>, vector<256x128xbf16>, vector<16x128xf32> -> vector<16x128xf32>
    %c0_42 = arith.constant 0 : index
    %c0_43 = arith.constant 0 : index
    %103 = vector.load %arg5[%c0_42, %c0_43] : memref<1x128xf32, #tpu.memory_space<vmem>>, vector<1x128xf32>
    %104 = vector.broadcast %103 : vector<1x128xf32> to vector<16x128xf32>
    %105 = arith.addf %102, %104 : vector<16x128xf32>
    %c0_44 = arith.constant 0 : index
    %c0_45 = arith.constant 0 : index
    %c0_46 = arith.constant 0 : index
    %106 = vector.load %arg4[%c0_44, %c0_45, %c0_46] : memref<1x16x1xf32, #tpu.memory_space<vmem>>, vector<1x16x1xf32>
    %107 = vector.shape_cast %106 : vector<1x16x1xf32> to vector<16x1xf32>
    %cst_47 = arith.constant 1.000000e-03 : f32
    %108 = vector.broadcast %cst_47 : f32 to vector<16x1xf32>
    %109 = arith.addf %108, %107 : vector<16x1xf32>
    %110 = tpu.reciprocal %109 {approx = true} : vector<16x1xf32> -> vector<16x1xf32>
    %111 = vector.broadcast %110 : vector<16x1xf32> to vector<16x128xf32>
    %112 = arith.mulf %105, %111 : vector<16x128xf32>
    %c0_48 = arith.constant 0 : index
    %c0_49 = arith.constant 0 : index
    %c0_50 = arith.constant 0 : index
    %113 = vector.load %arg6[%c0_48, %c0_49, %c0_50] : memref<1x16x128xf32, #tpu.memory_space<vmem>>, vector<1x16x128xf32>
    %114 = vector.shape_cast %113 : vector<1x16x128xf32> to vector<16x128xf32>
    %115 = vector.shape_cast %112 : vector<16x128xf32> to vector<1x16x128xf32>
    tpu.vector_store %arg6[%c0_48, %c0_49, %c0_50], %115 {strides = array<i32>} : memref<1x16x128xf32, #tpu.memory_space<vmem>>, vector<1x16x128xf32>,
    return
  }
  func.func @transform_0(%arg0: i32) -> (i32, i32, i32) {
    %c0_i32 = arith.constant 0 : i32
    %c0_i32_0 = arith.constant 0 : i32
    %c0_i32_1 = arith.constant 0 : i32
    return %arg0, %c0_i32, %c0_i32_0 : i32, i32, i32
  }
  func.func @transform_1(%arg0: i32) -> (i32, i32) {
    %c0_i32 = arith.constant 0 : i32
    %c0_i32_0 = arith.constant 0 : i32
    %c0_i32_1 = arith.constant 0 : i32
    return %c0_i32, %c0_i32_0 : i32, i32
  }
  func.func @transform_2(%arg0: i32) -> (i32, i32) {
    %c0_i32 = arith.constant 0 : i32
    %c0_i32_0 = arith.constant 0 : i32
    %c0_i32_1 = arith.constant 0 : i32
    return %c0_i32, %c0_i32_0 : i32, i32
  }
  func.func @transform_3(%arg0: i32) -> (i32, i32, i32) {
    %c0_i32 = arith.constant 0 : i32
    %c0_i32_0 = arith.constant 0 : i32
    %c0_i32_1 = arith.constant 0 : i32
    return %arg0, %c0_i32, %c0_i32_0 : i32, i32, i32
  }
  func.func @transform_4(%arg0: i32) -> (i32, i32) {
    %c0_i32 = arith.constant 0 : i32
    %c0_i32_0 = arith.constant 0 : i32
    %c0_i32_1 = arith.constant 0 : i32
    return %c0_i32, %c0_i32_0 : i32, i32
  }
  func.func @transform_5(%arg0: i32) -> (i32, i32, i32) {
    %c0_i32 = arith.constant 0 : i32
    %c0_i32_0 = arith.constant 0 : i32
    %c0_i32_1 = arith.constant 0 : i32
    return %arg0, %c0_i32, %c0_i32_0 : i32, i32, i32
  }
}

module attributes {stable_mosaic.version = 11 : i64} {
  func.func @_norm_kernel(%arg0: memref<16x8xf32, #tpu.memory_space<vmem>>, %arg1: memref<8x16xf32, #tpu.memory_space<vmem>>, %arg2: memref<16x16xf32, #tpu.memory_space<vmem>>) attributes {dimension_semantics = [], scalar_prefetch = 0 : i64, scratch_operands = 0 : i64, tpu.core_type = #tpu.core_type<tc>} {
    %c0 = arith.constant 0 : index
    %c0_0 = arith.constant 0 : index
    %0 = vector.load %arg0[%c0, %c0_0] : memref<16x8xf32, #tpu.memory_space<vmem>>, vector<16x8xf32>
    %c0_1 = arith.constant 0 : index
    %c0_2 = arith.constant 0 : index
    %1 = vector.load %arg1[%c0_1, %c0_2] : memref<8x16xf32, #tpu.memory_space<vmem>>, vector<8x16xf32>
    %cst = arith.constant dense<0.000000e+00> : vector<16x16xf32>
    %2 = tpu.matmul %0, %1, %cst {dimension_numbers = #tpu.dot_dimension_numbers<[1], [0], [0], [1], [0, 0, 1, 1], [], []>} : vector<16x8xf32>, vector<8x16xf32>, vector<16x16xf32> -> vector<16x16xf32>
    %c0_3 = arith.constant 0 : index
    %c0_4 = arith.constant 0 : index
    %3 = vector.load %arg2[%c0_3, %c0_4] : memref<16x16xf32, #tpu.memory_space<vmem>>, vector<16x16xf32>
    tpu.vector_store %arg2[%c0_3, %c0_4], %2 {strides = array<i32>} : memref<16x16xf32, #tpu.memory_space<vmem>>, vector<16x16xf32>,
    return
  }
}

</mosaic_0001>

<llo_original>
// kernel: outer_product_mean.4
$region0: #{outer_product_mean.4}
  #allocation0 [shape = 'u32[]', space=smem, size = 0x4, offset = 0x4, fixed_abs, tag = 'smem constant byte address 0x4 - core index']
  #allocation1 [shape = 'u32[72,128]{1,0:T(1,128)}', space=vmem, size = 0x9000, scoped, tag = 'internal scratch']
  %s0 = inlined_call_operand.vmem [shape: f32[16,8], index: 0, kind: input, shape index: {}]
  %s1 = inlined_call_operand.vmem [shape: f32[8,16], index: 1, kind: input, shape index: {}]
  %s2 = inlined_call_operand.vmem [shape: f32[16,16], index: 2, kind: output, shape index: {}]
  %s3 = sld [smem:[#allocation0]]
  $region18: #{outer_product_mean.4} parent=0
    _
  %s5 = ssub.s32 1, %s3
  %s6 = scalar_select 0, %s5, %s3
  // Predicated region
  $region2: #{outer_product_mean.4} parent=0 // pred_check
    _
  $region3: #{outer_product_mean.4} parent=0 // pred_check_branch
    %8 = sbr.rel (0) target = $region5
  $region4: #{outer_product_mean.4} parent=0 // pred_region
    _
  $region5: #{outer_product_mean.4} parent=0 // pred_fallthru
    _
  // Predicated region
  $region6: #{outer_product_mean.4} parent=0 // pred_check
    _
  $region7: #{outer_product_mean.4} parent=0 // pred_check_branch
    %10 = sbr.rel (0) target = $region9
  $region8: #{outer_product_mean.4} parent=0 // pred_region
    _
  $region9: #{outer_product_mean.4} parent=0 // pred_fallthru
    _
  %v11 = vld [vmem:[%s0] sm:$0xff]
  %v12 = vld [vmem:[%s0 + $0x8] sm:$0xff]
  %v13 = vld [vmem:[%s1] sm:$0xff]
  %vm14 = vcmask 64512
  %v16 = vsel %vm14, %v11, 0
  %v19 = vsel %vm14, %v12, 0
  %21 = vmatpush.msra.mxu0 0.0
  %22 = vmatpush.msra.mxu0 0.0
  %23 = vmatpush.msra.mxu0 0.0
  %24 = vmatpush.msra.mxu0 0.0
  %25 = vmatpush.msra.mxu0 0.0
  %26 = vmatpush.msra.mxu0 0.0
  %27 = vmatpush.msra.mxu0 0.0
  %28 = vmatpush.msra.mxu0 0.0
  %29 = vmatpush.msra.mxu0 0.0
  %30 = vmatpush.msra.mxu0 0.0
  %31 = vmatpush.msra.mxu0 0.0
  %32 = vmatpush.msra.mxu0 0.0
  %33 = vmatpush.msra.mxu0 0.0
  %34 = vmatpush.msra.mxu0 0.0
  %35 = vmatpush.msra.mxu0 0.0
  %36 = vmatpush.msra.mxu0 %v13
  %37 = vmatmul.f32.gmra.mxu0 %v16
  %v38 = vpop.f32.mrf.mxu0
  %v39 = vadd.f32 0.0, %v38
  %40 = vmatmul.f32.gmra.mxu0 %v19
  %v41 = vpop.f32.mrf.mxu0
  %v42 = vadd.f32 0.0, %v41
  %43 = vdwg.mxu0
  %vm44 = vcmask 130048
  %45 = vst.msk [vmem:[%s2] sm:$0xff] %vm44, %v39
  %46 = vst.msk [vmem:[%s2 + $0x8] sm:$0xff] %vm44, %v42
  // Predicated region
  $region10: #{outer_product_mean.4} parent=0 // pred_check
    _
  $region11: #{outer_product_mean.4} parent=0 // pred_check_branch
    %48 = sbr.rel (0) target = $region13
  $region12: #{outer_product_mean.4} parent=0 // pred_region
    _
  $region13: #{outer_product_mean.4} parent=0 // pred_fallthru
    _
  // Predicated region
  $region14: #{outer_product_mean.4} parent=0 // pred_check
    _
  $region15: #{outer_product_mean.4} parent=0 // pred_check_branch
    %50 = sbr.rel (0) target = $region17
  $region16: #{outer_product_mean.4} parent=0 // pred_region
    _
  $region17: #{outer_product_mean.4} parent=0 // pred_fallthru
    _

// kernel: outer_product_mean.3
$region0: #{outer_product_mean.3}
  #allocation0 [shape = 'u32[]', space=smem, size = 0x4, offset = 0x4, fixed_abs, tag = 'smem constant byte address 0x4 - core index']
  #allocation1 [shape = 'u32[72,128]{1,0:T(1,128)}', space=vmem, size = 0x9000, scoped, tag = 'internal scratch']
  %s0 = inlined_call_operand.hbm [shape: f32[128,64], index: 0, kind: input, shape index: {}]
  %s1 = inlined_call_operand.vmem [shape: f32[128,1], index: 1, kind: input, shape index: {}]
  %s2 = inlined_call_operand.hbm [shape: f32[1,64], index: 2, kind: input, shape index: {}]
  %s3 = inlined_call_operand.hbm [shape: f32[1,64], index: 3, kind: input, shape index: {}]
  %s4 = inlined_call_operand.vmem [shape: bf16[64,64], index: 4, kind: input, shape index: {}]
  %s5 = inlined_call_operand.vmem [shape: bf16[128,64], index: 5, kind: output, shape index: {}]
  %s6 = sld [smem:[#allocation0]]
  $region42: #{outer_product_mean.3} parent=0
    _
  %s8 = ssub.s32 1, %s6
  %s9 = scalar_select 0, %s8, %s6
  $region1: #{outer_product_mean.3} parent=0
    #allocation2 [shape = 'u8[65536]{0}', space=vmem, size = 0x10000, scoped, tag = 'input window, operand 0, single buffered']
    #allocation3 [shape = 's32[1]{0}', space=sflag, size = 0x4, scoped, tag = 'scoped memory for outer_product_mean.3']
    #allocation4 [shape = 'u8[512]{0}', space=vmem, size = 0x400, scoped, tag = 'input window, operand 2, single buffered']
    #allocation5 [shape = 's32[1]{0}', space=sflag, size = 0x4, scoped, tag = 'scoped memory for outer_product_mean.3']
    #allocation6 [shape = 'u8[512]{0}', space=vmem, size = 0x400, scoped, tag = 'input window, operand 3, single buffered']
    %10 = vsyncpa [#allocation3], 0
    %11 = vsyncpa [#allocation5], 0
    // Predicated region
    $region2: #{outer_product_mean.3} parent=1 // pred_check
      _
    $region3: #{outer_product_mean.3} parent=1 // pred_check_branch
      %13 = sbr.rel (0) target = $region5
    $region4: #{outer_product_mean.3} parent=1 // pred_region
      %15 = vsyncadd [#allocation3], 0
      %s16 = sshll.u32 %s0, 4
      %s17 = int_to_ptr.hbm [resolvable:$true] %s16
      %s18 = sshll.u32 [#allocation2], 4
      %s19 = int_to_ptr.vmem [resolvable:$true] %s18
      %24 = dma.hbm_to_vmem [thread:$0]  %s17, 2048, %s19, [#allocation3], 128, 128, 8
    $region5: #{outer_product_mean.3} parent=1 // pred_fallthru
      _
    // Predicated region
    $region6: #{outer_product_mean.3} parent=1 // pred_check
      _
    $region7: #{outer_product_mean.3} parent=1 // pred_check_branch
      %26 = sbr.rel (0) target = $region9
    $region8: #{outer_product_mean.3} parent=1 // pred_region
      _
    $region9: #{outer_product_mean.3} parent=1 // pred_fallthru
      _
    // Predicated region
    $region10: #{outer_product_mean.3} parent=1 // pred_check
      _
    $region11: #{outer_product_mean.3} parent=1 // pred_check_branch
      %28 = sbr.rel (0) target = $region13
    $region12: #{outer_product_mean.3} parent=1 // pred_region
      %30 = vsyncadd [#allocation5], 0
      %s32 = sshll.u32 %s2, 4
      %s33 = int_to_ptr.hbm [resolvable:$true] %s32
      %s34 = sshll.u32 [#allocation4], 4
      %s35 = int_to_ptr.vmem [resolvable:$true] %s34
      %37 = dma.hbm_to_vmem [thread:$0]  %s33, 16, %s35, [#allocation5]
    $region13: #{outer_product_mean.3} parent=1 // pred_fallthru
      _
    // Predicated region
    $region14: #{outer_product_mean.3} parent=1 // pred_check
      _
    $region15: #{outer_product_mean.3} parent=1 // pred_check_branch
      %39 = sbr.rel (0) target = $region17
    $region16: #{outer_product_mean.3} parent=1 // pred_region
      %41 = vsyncadd [#allocation5], 0
      %s43 = sshll.u32 %s3, 4
      %s44 = int_to_ptr.hbm [resolvable:$true] %s43
      %s45 = sshll.u32 [#allocation6], 4
      %s46 = int_to_ptr.vmem [resolvable:$true] %s45
      %48 = dma.hbm_to_vmem [thread:$0]  %s44, 16, %s46, [#allocation5]
    $region17: #{outer_product_mean.3} parent=1 // pred_fallthru
      _
    // Predicated region
    $region18: #{outer_product_mean.3} parent=1 // pred_check
      _
    $region19: #{outer_product_mean.3} parent=1 // pred_check_branch
      %50 = sbr.rel (0) target = $region21
    $region20: #{outer_product_mean.3} parent=1 // pred_region
      _
    $region21: #{outer_product_mean.3} parent=1 // pred_fallthru
      _
    // Predicated region
    $region22: #{outer_product_mean.3} parent=1 // pred_check
      _
    $region23: #{outer_product_mean.3} parent=1 // pred_check_branch
      %52 = sbr.rel (0) target = $region25
    $region24: #{outer_product_mean.3} parent=1 // pred_region
      %54 = dma.done [#allocation3], 2048
    $region25: #{outer_product_mean.3} parent=1 // pred_fallthru
      _
    // Predicated region
    $region26: #{outer_product_mean.3} parent=1 // pred_check
      _
    $region27: #{outer_product_mean.3} parent=1 // pred_check_branch
      %56 = sbr.rel (0) target = $region29
    $region28: #{outer_product_mean.3} parent=1 // pred_region
      %58 = dma.done [#allocation5], 16
    $region29: #{outer_product_mean.3} parent=1 // pred_fallthru
      _
    // Predicated region
    $region30: #{outer_product_mean.3} parent=1 // pred_check
      _
    $region31: #{outer_product_mean.3} parent=1 // pred_check_branch
      %60 = sbr.rel (0) target = $region33
    $region32: #{outer_product_mean.3} parent=1 // pred_region
      %62 = dma.done [#allocation5], 16
    $region33: #{outer_product_mean.3} parent=1 // pred_fallthru
      _
    %v64 = vld [vmem:[#allocation2] sm:$0xff]
    %v65 = vld [vmem:[#allocation2 + $0x8] sm:$0xff]
    %v66 = vld [vmem:[#allocation2 + $0x10] sm:$0xff]
    %v67 = vld [vmem:[#allocation2 + $0x18] sm:$0xff]
    %v68 = vld [vmem:[#allocation2 + $0x20] sm:$0xff]
    %v69 = vld [vmem:[#allocation2 + $0x28] sm:$0xff]
    %v70 = vld [vmem:[#allocation2 + $0x30] sm:$0xff]
    %v71 = vld [vmem:[#allocation2 + $0x38] sm:$0xff]
    %v72 = vld [vmem:[#allocation2 + $0x40] sm:$0xff]
    %v73 = vld [vmem:[#allocation2 + $0x48] sm:$0xff]
    %v74 = vld [vmem:[#allocation2 + $0x50] sm:$0xff]
    %v75 = vld [vmem:[#allocation2 + $0x58] sm:$0xff]
    %v76 = vld [vmem:[#allocation2 + $0x60] sm:$0xff]
    %v77 = vld [vmem:[#allocation2 + $0x68] sm:$0xff]
    %v78 = vld [vmem:[#allocation2 + $0x70] sm:$0xff]
    %v79 = vld [vmem:[#allocation2 + $0x78] sm:$0xff]
    %vm80 = vcmask 523264
    %v81 = vsel %vm80, %v64, 0.0
    %82 = vadd.xlane.f32.xlu0 %v81
    %v83 = vpop.xlane.xlu0 %82
    %v84 = vsel %vm80, %v65, 0.0
    %85 = vadd.xlane.f32.xlu0 %v84
    %v86 = vpop.xlane.xlu0 %85
    %v87 = vsel %vm80, %v66, 0.0
    %88 = vadd.xlane.f32.xlu0 %v87
    %v89 = vpop.xlane.xlu0 %88
    %v90 = vsel %vm80, %v67, 0.0
    %91 = vadd.xlane.f32.xlu0 %v90
    %v92 = vpop.xlane.xlu0 %91
    %v93 = vsel %vm80, %v68, 0.0
    %94 = vadd.xlane.f32.xlu0 %v93
    %v95 = vpop.xlane.xlu0 %94
    %v96 = vsel %vm80, %v69, 0.0
    %97 = vadd.xlane.f32.xlu0 %v96
    %v98 = vpop.xlane.xlu0 %97
    %v99 = vsel %vm80, %v70, 0.0
    %100 = vadd.xlane.f32.xlu0 %v99
    %v101 = vpop.xlane.xlu0 %100
    %v102 = vsel %vm80, %v71, 0.0
    %103 = vadd.xlane.f32.xlu0 %v102
    %v104 = vpop.xlane.xlu0 %103
    %v105 = vsel %vm80, %v72, 0.0
    %106 = vadd.xlane.f32.xlu0 %v105
    %v107 = vpop.xlane.xlu0 %106
    %v108 = vsel %vm80, %v73, 0.0
    %109 = vadd.xlane.f32.xlu0 %v108
    %v110 = vpop.xlane.xlu0 %109
    %v111 = vsel %vm80, %v74, 0.0
    %112 = vadd.xlane.f32.xlu0 %v111
    %v113 = vpop.xlane.xlu0 %112
    %v114 = vsel %vm80, %v75, 0.0
    %115 = vadd.xlane.f32.xlu0 %v114
    %v116 = vpop.xlane.xlu0 %115
    %v117 = vsel %vm80, %v76, 0.0
    %118 = vadd.xlane.f32.xlu0 %v117
    %v119 = vpop.xlane.xlu0 %118
    %v120 = vsel %vm80, %v77, 0.0
    %121 = vadd.xlane.f32.xlu0 %v120
    %v122 = vpop.xlane.xlu0 %121
    %v123 = vsel %vm80, %v78, 0.0
    %124 = vadd.xlane.f32.xlu0 %v123
    %v125 = vpop.xlane.xlu0 %124
    %v126 = vsel %vm80, %v79, 0.0
    %127 = vadd.xlane.f32.xlu0 %v126
    %v128 = vpop.xlane.xlu0 %127
    %v129 = vrcp.pop 64.0
    %v130 = vmul.f32 64.0, %v129
    %v131 = vsub.f32 1.0, %v130
    %v132 = vmul.f32 %v129, %v131
    %v133 = vadd.f32 %v129, %v132
    %vm134 = vweird.f32 %v129
    %v135 = vsel %vm134, %v129, %v133
    %v136 = vmul.f32 %v83, %v135
    %v137 = vmul.f32 %v86, %v135
    %v138 = vmul.f32 %v89, %v135
    %v139 = vmul.f32 %v92, %v135
    %v140 = vmul.f32 %v95, %v135
    %v141 = vmul.f32 %v98, %v135
    %v142 = vmul.f32 %v101, %v135
    %v143 = vmul.f32 %v104, %v135
    %v144 = vmul.f32 %v107, %v135
    %v145 = vmul.f32 %v110, %v135
    %v146 = vmul.f32 %v113, %v135
    %v147 = vmul.f32 %v116, %v135
    %v148 = vmul.f32 %v119, %v135
    %v149 = vmul.f32 %v122, %v135
    %v150 = vmul.f32 %v125, %v135
    %v151 = vmul.f32 %v128, %v135
    %v152 = vsub.f32 %v64, %v136
    %v153 = vsub.f32 %v65, %v137
    %v154 = vsub.f32 %v66, %v138
    %v155 = vsub.f32 %v67, %v139
    %v156 = vsub.f32 %v68, %v140
    %v157 = vsub.f32 %v69, %v141
    %v158 = vsub.f32 %v70, %v142
    %v159 = vsub.f32 %v71, %v143
    %v160 = vsub.f32 %v72, %v144
    %v161 = vsub.f32 %v73, %v145
    %v162 = vsub.f32 %v74, %v146
    %v163 = vsub.f32 %v75, %v147
    %v164 = vsub.f32 %v76, %v148
    %v165 = vsub.f32 %v77, %v149
    %v166 = vsub.f32 %v78, %v150
    %v167 = vsub.f32 %v79, %v151
    %v168 = vmul.f32 %v152, %v152
    %v169 = vmul.f32 %v153, %v153
    %v170 = vmul.f32 %v154, %v154
    %v171 = vmul.f32 %v155, %v155
    %v172 = vmul.f32 %v156, %v156
    %v173 = vmul.f32 %v157, %v157
    %v174 = vmul.f32 %v158, %v158
    %v175 = vmul.f32 %v159, %v159
    %v176 = vmul.f32 %v160, %v160
    %v177 = vmul.f32 %v161, %v161
    %v178 = vmul.f32 %v162, %v162
    %v179 = vmul.f32 %v163, %v163
    %v180 = vmul.f32 %v164, %v164
    %v181 = vmul.f32 %v165, %v165
    %v182 = vmul.f32 %v166, %v166
    %v183 = vmul.f32 %v167, %v167
    %v184 = vsel %vm80, %v168, 0.0
    %185 = vadd.xlane.f32.xlu0 %v184
    %v186 = vpop.xlane.xlu0 %185
    %v187 = vsel %vm80, %v169, 0.0
    %188 = vadd.xlane.f32.xlu0 %v187
    %v189 = vpop.xlane.xlu0 %188
    %v190 = vsel %vm80, %v170, 0.0
    %191 = vadd.xlane.f32.xlu0 %v190
    %v192 = vpop.xlane.xlu0 %191
    %v193 = vsel %vm80, %v171, 0.0
    %194 = vadd.xlane.f32.xlu0 %v193
    %v195 = vpop.xlane.xlu0 %194
    %v196 = vsel %vm80, %v172, 0.0
    %197 = vadd.xlane.f32.xlu0 %v196
    %v198 = vpop.xlane.xlu0 %197
    %v199 = vsel %vm80, %v173, 0.0
    %200 = vadd.xlane.f32.xlu0 %v199
    %v201 = vpop.xlane.xlu0 %200
    %v202 = vsel %vm80, %v174, 0.0
    %203 = vadd.xlane.f32.xlu0 %v202
    %v204 = vpop.xlane.xlu0 %203
    %v205 = vsel %vm80, %v175, 0.0
    %206 = vadd.xlane.f32.xlu0 %v205
    %v207 = vpop.xlane.xlu0 %206
    %v208 = vsel %vm80, %v176, 0.0
    %209 = vadd.xlane.f32.xlu0 %v208
    %v210 = vpop.xlane.xlu0 %209
    %v211 = vsel %vm80, %v177, 0.0
    %212 = vadd.xlane.f32.xlu0 %v211
    %v213 = vpop.xlane.xlu0 %212
    %v214 = vsel %vm80, %v178, 0.0
    %215 = vadd.xlane.f32.xlu0 %v214
    %v216 = vpop.xlane.xlu0 %215
    %v217 = vsel %vm80, %v179, 0.0
    %218 = vadd.xlane.f32.xlu0 %v217
    %v219 = vpop.xlane.xlu0 %218
    %v220 = vsel %vm80, %v180, 0.0
    %221 = vadd.xlane.f32.xlu0 %v220
    %v222 = vpop.xlane.xlu0 %221
    %v223 = vsel %vm80, %v181, 0.0
    %224 = vadd.xlane.f32.xlu0 %v223
    %v225 = vpop.xlane.xlu0 %224
    %v226 = vsel %vm80, %v182, 0.0
    %227 = vadd.xlane.f32.xlu0 %v226
    %v228 = vpop.xlane.xlu0 %227
    %v229 = vsel %vm80, %v183, 0.0
    %230 = vadd.xlane.f32.xlu0 %v229
    %v231 = vpop.xlane.xlu0 %230
    %v232 = vmul.f32 %v186, %v135
    %v233 = vmul.f32 %v189, %v135
    %v234 = vmul.f32 %v192, %v135
    %v235 = vmul.f32 %v195, %v135
    %v236 = vmul.f32 %v198, %v135
    %v237 = vmul.f32 %v201, %v135
    %v238 = vmul.f32 %v204, %v135
    %v239 = vmul.f32 %v207, %v135
    %v240 = vmul.f32 %v210, %v135
    %v241 = vmul.f32 %v213, %v135
    %v242 = vmul.f32 %v216, %v135
    %v243 = vmul.f32 %v219, %v135
    %v244 = vmul.f32 %v222, %v135
    %v245 = vmul.f32 %v225, %v135
    %v246 = vmul.f32 %v228, %v135
    %v247 = vmul.f32 %v231, %v135
    %v248 = vadd.f32 %v232, 1e-05
    %v249 = vadd.f32 %v233, 1e-05
    %v250 = vadd.f32 %v234, 1e-05
    %v251 = vadd.f32 %v235, 1e-05
    %v252 = vadd.f32 %v236, 1e-05
    %v253 = vadd.f32 %v237, 1e-05
    %v254 = vadd.f32 %v238, 1e-05
    %v255 = vadd.f32 %v239, 1e-05
    %v256 = vadd.f32 %v240, 1e-05
    %v257 = vadd.f32 %v241, 1e-05
    %v258 = vadd.f32 %v242, 1e-05
    %v259 = vadd.f32 %v243, 1e-05
    %v260 = vadd.f32 %v244, 1e-05
    %v261 = vadd.f32 %v245, 1e-05
    %v262 = vadd.f32 %v246, 1e-05
    %v263 = vadd.f32 %v247, 1e-05
    %v264 = vrsqrt.pop %v248
    %v265 = vmul.f32 %v264, %v248
    %v266 = vmul.f32 %v265, %v264
    %v267 = vmul.f32 0.5, %v266
    %v268 = vsub.f32 1.5, %v267
    %v269 = vmul.f32 %v264, %v268
    %vm270 = vweird.f32 %v248
    %vm271 = vweird.f32 %v264
    %vm272 = vmor %vm270, %vm271
    %v273 = vsel %vm272, %v264, %v269
    %v274 = vrsqrt.pop %v249
    %v275 = vmul.f32 %v274, %v249
    %v276 = vmul.f32 %v275, %v274
    %v277 = vmul.f32 0.5, %v276
    %v278 = vsub.f32 1.5, %v277
    %v279 = vmul.f32 %v274, %v278
    %vm280 = vweird.f32 %v249
    %vm281 = vweird.f32 %v274
    %vm282 = vmor %vm280, %vm281
    %v283 = vsel %vm282, %v274, %v279
    %v284 = vrsqrt.pop %v250
    %v285 = vmul.f32 %v284, %v250
    %v286 = vmul.f32 %v285, %v284
    %v287 = vmul.f32 0.5, %v286
    %v288 = vsub.f32 1.5, %v287
    %v289 = vmul.f32 %v284, %v288
    %vm290 = vweird.f32 %v250
    %vm291 = vweird.f32 %v284
    %vm292 = vmor %vm290, %vm291
    %v293 = vsel %vm292, %v284, %v289
    %v294 = vrsqrt.pop %v251
    %v295 = vmul.f32 %v294, %v251
    %v296 = vmul.f32 %v295, %v294
    %v297 = vmul.f32 0.5, %v296
    %v298 = vsub.f32 1.5, %v297
    %v299 = vmul.f32 %v294, %v298
    %vm300 = vweird.f32 %v251
    %vm301 = vweird.f32 %v294
    %vm302 = vmor %vm300, %vm301
    %v303 = vsel %vm302, %v294, %v299
    %v304 = vrsqrt.pop %v252
    %v305 = vmul.f32 %v304, %v252
    %v306 = vmul.f32 %v305, %v304
    %v307 = vmul.f32 0.5, %v306
    %v308 = vsub.f32 1.5, %v307
    %v309 = vmul.f32 %v304, %v308
    %vm310 = vweird.f32 %v252
    %vm311 = vweird.f32 %v304
    %vm312 = vmor %vm310, %vm311
    %v313 = vsel %vm312, %v304, %v309
    %v314 = vrsqrt.pop %v253
    %v315 = vmul.f32 %v314, %v253
    %v316 = vmul.f32 %v315, %v314
    %v317 = vmul.f32 0.5, %v316
    %v318 = vsub.f32 1.5, %v317
    %v319 = vmul.f32 %v314, %v318
    %vm320 = vweird.f32 %v253
    %vm321 = vweird.f32 %v314
    %vm322 = vmor %vm320, %vm321
    %v323 = vsel %vm322, %v314, %v319
    %v324 = vrsqrt.pop %v254
    %v325 = vmul.f32 %v324, %v254
    %v326 = vmul.f32 %v325, %v324
    %v327 = vmul.f32 0.5, %v326
    %v328 = vsub.f32 1.5, %v327
    %v329 = vmul.f32 %v324, %v328
    %vm330 = vweird.f32 %v254
    %vm331 = vweird.f32 %v324
    %vm332 = vmor %vm330, %vm331
    %v333 = vsel %vm332, %v324, %v329
    %v334 = vrsqrt.pop %v255
    %v335 = vmul.f32 %v334, %v255
    %v336 = vmul.f32 %v335, %v334
    %v337 = vmul.f32 0.5, %v336
    %v338 = vsub.f32 1.5, %v337
    %v339 = vmul.f32 %v334, %v338
    %vm340 = vweird.f32 %v255
    %vm341 = vweird.f32 %v334
    %vm342 = vmor %vm340, %vm341
    %v343 = vsel %vm342, %v334, %v339
    %v344 = vrsqrt.pop %v256
    %v345 = vmul.f32 %v344, %v256
    %v346 = vmul.f32 %v345, %v344
    %v347 = vmul.f32 0.5, %v346
    %v348 = vsub.f32 1.5, %v347
    %v349 = vmul.f32 %v344, %v348
    %vm350 = vweird.f32 %v256
    %vm351 = vweird.f32 %v344
    %vm352 = vmor %vm350, %vm351
    %v353 = vsel %vm352, %v344, %v349
    %v354 = vrsqrt.pop %v257
    %v355 = vmul.f32 %v354, %v257
    %v356 = vmul.f32 %v355, %v354
    %v357 = vmul.f32 0.5, %v356
    %v358 = vsub.f32 1.5, %v357
    %v359 = vmul.f32 %v354, %v358
    %vm360 = vweird.f32 %v257
    %vm361 = vweird.f32 %v354
    %vm362 = vmor %vm360, %vm361
    %v363 = vsel %vm362, %v354, %v359
    %v364 = vrsqrt.pop %v258
    %v365 = vmul.f32 %v364, %v258
    %v366 = vmul.f32 %v365, %v364
    %v367 = vmul.f32 0.5, %v366
    %v368 = vsub.f32 1.5, %v367
    %v369 = vmul.f32 %v364, %v368
    %vm370 = vweird.f32 %v258
    %vm371 = vweird.f32 %v364
    %vm372 = vmor %vm370, %vm371
    %v373 = vsel %vm372, %v364, %v369
    %v374 = vrsqrt.pop %v259
    %v375 = vmul.f32 %v374, %v259
    %v376 = vmul.f32 %v375, %v374
    %v377 = vmul.f32 0.5, %v376
    %v378 = vsub.f32 1.5, %v377
    %v379 = vmul.f32 %v374, %v378
    %vm380 = vweird.f32 %v259
    %vm381 = vweird.f32 %v374
    %vm382 = vmor %vm380, %vm381
    %v383 = vsel %vm382, %v374, %v379
    %v384 = vrsqrt.pop %v260
    %v385 = vmul.f32 %v384, %v260
    %v386 = vmul.f32 %v385, %v384
    %v387 = vmul.f32 0.5, %v386
    %v388 = vsub.f32 1.5, %v387
    %v389 = vmul.f32 %v384, %v388
    %vm390 = vweird.f32 %v260
    %vm391 = vweird.f32 %v384
    %vm392 = vmor %vm390, %vm391
    %v393 = vsel %vm392, %v384, %v389
    %v394 = vrsqrt.pop %v261
    %v395 = vmul.f32 %v394, %v261
    %v396 = vmul.f32 %v395, %v394
    %v397 = vmul.f32 0.5, %v396
    %v398 = vsub.f32 1.5, %v397
    %v399 = vmul.f32 %v394, %v398
    %vm400 = vweird.f32 %v261
    %vm401 = vweird.f32 %v394
    %vm402 = vmor %vm400, %vm401
    %v403 = vsel %vm402, %v394, %v399
    %v404 = vrsqrt.pop %v262
    %v405 = vmul.f32 %v404, %v262
    %v406 = vmul.f32 %v405, %v404
    %v407 = vmul.f32 0.5, %v406
    %v408 = vsub.f32 1.5, %v407
    %v409 = vmul.f32 %v404, %v408
    %vm410 = vweird.f32 %v262
    %vm411 = vweird.f32 %v404
    %vm412 = vmor %vm410, %vm411
    %v413 = vsel %vm412, %v404, %v409
    %v414 = vrsqrt.pop %v263
    %v415 = vmul.f32 %v414, %v263
    %v416 = vmul.f32 %v415, %v414
    %v417 = vmul.f32 0.5, %v416
    %v418 = vsub.f32 1.5, %v417
    %v419 = vmul.f32 %v414, %v418
    %vm420 = vweird.f32 %v263
    %vm421 = vweird.f32 %v414
    %vm422 = vmor %vm420, %vm421
    %v423 = vsel %vm422, %v414, %v419
    %v424 = vmul.f32 %v152, %v273
    %v425 = vmul.f32 %v153, %v283
    %v426 = vmul.f32 %v154, %v293
    %v427 = vmul.f32 %v155, %v303
    %v428 = vmul.f32 %v156, %v313
    %v429 = vmul.f32 %v157, %v323
    %v430 = vmul.f32 %v158, %v333
    %v431 = vmul.f32 %v159, %v343
    %v432 = vmul.f32 %v160, %v353
    %v433 = vmul.f32 %v161, %v363
    %v434 = vmul.f32 %v162, %v373
    %v435 = vmul.f32 %v163, %v383
    %v436 = vmul.f32 %v164, %v393
    %v437 = vmul.f32 %v165, %v403
    %v438 = vmul.f32 %v166, %v413
    %v439 = vmul.f32 %v167, %v423
    %v440 = vld [vmem:[#allocation4] sm:$0x1]
    %v442 = vperm.slane %v440, 0
    %v444 = vmul.f32 %v424, %v442
    %v445 = vmul.f32 %v425, %v442
    %v446 = vmul.f32 %v426, %v442
    %v447 = vmul.f32 %v427, %v442
    %v448 = vmul.f32 %v428, %v442
    %v449 = vmul.f32 %v429, %v442
    %v450 = vmul.f32 %v430, %v442
    %v451 = vmul.f32 %v431, %v442
    %v452 = vmul.f32 %v432, %v442
    %v453 = vmul.f32 %v433, %v442
    %v454 = vmul.f32 %v434, %v442
    %v455 = vmul.f32 %v435, %v442
    %v456 = vmul.f32 %v436, %v442
    %v457 = vmul.f32 %v437, %v442
    %v458 = vmul.f32 %v438, %v442
    %v459 = vmul.f32 %v439, %v442
    %v460 = vld [vmem:[#allocation6] sm:$0x1]
    %v462 = vperm.slane %v460, 0
    %v464 = vadd.f32 %v444, %v462
    %v465 = vadd.f32 %v445, %v462
    %v466 = vadd.f32 %v446, %v462
    %v467 = vadd.f32 %v447, %v462
    %v468 = vadd.f32 %v448, %v462
    %v469 = vadd.f32 %v449, %v462
    %v470 = vadd.f32 %v450, %v462
    %v471 = vadd.f32 %v451, %v462
    %v472 = vadd.f32 %v452, %v462
    %v473 = vadd.f32 %v453, %v462
    %v474 = vadd.f32 %v454, %v462
    %v475 = vadd.f32 %v455, %v462
    %v476 = vadd.f32 %v456, %v462
    %v477 = vadd.f32 %v457, %v462
    %v478 = vadd.f32 %v458, %v462
    %v479 = vadd.f32 %v459, %v462
    %v480 = vpack.c.bf16 %v465, %v464
    %v481 = vpack.c.bf16 %v467, %v466
    %v482 = vpack.c.bf16 %v469, %v468
    %v483 = vpack.c.bf16 %v471, %v470
    %v484 = vpack.c.bf16 %v473, %v472
    %v485 = vpack.c.bf16 %v475, %v474
    %v486 = vpack.c.bf16 %v477, %v476
    %v487 = vpack.c.bf16 %v479, %v478
    %v488 = vld [vmem:[%s4] sm:$0xf]
    %v489 = vld [vmem:[%s4 + $0x4] sm:$0xf]
    %v490 = vld [vmem:[%s4 + $0x8] sm:$0xf]
    %v491 = vld [vmem:[%s4 + $0xc] sm:$0xf]
    %v492 = vld [vmem:[%s4 + $0x10] sm:$0xf]
    %v493 = vld [vmem:[%s4 + $0x14] sm:$0xf]
    %v494 = vld [vmem:[%s4 + $0x18] sm:$0xf]
    %v495 = vld [vmem:[%s4 + $0x1c] sm:$0xf]
    %v504 = vunpack.c.l.b16 %v488
    %v505 = vunpack.c.l.b16 %v489
    %v506 = vunpack.c.l.b16 %v490
    %v507 = vunpack.c.l.b16 %v491
    %v508 = vunpack.c.l.b16 %v492
    %v509 = vunpack.c.l.b16 %v493
    %v510 = vunpack.c.l.b16 %v494
    %v511 = vunpack.c.l.b16 %v495
    %v512 = vpack.c.b16 %v505, %v504
    %v513 = vpack.c.b16 %v507, %v506
    %v514 = vpack.c.b16 %v509, %v508
    %v515 = vpack.c.b16 %v511, %v510
    %v521 = vsel %vm80, %v480, 0
    %v524 = vsel %vm80, %v481, 0
    %v527 = vsel %vm80, %v482, 0
    %v530 = vsel %vm80, %v483, 0
    %v533 = vsel %vm80, %v484, 0
    %v536 = vsel %vm80, %v485, 0
    %v539 = vsel %vm80, %v486, 0
    %v542 = vsel %vm80, %v487, 0
    %544 = vmatpush.bf16.msra.mxu0 0
    %545 = vmatpush.bf16.msra.mxu0 0
    %546 = vmatpush.bf16.msra.mxu0 0
    %547 = vmatpush.bf16.msra.mxu0 0
    %548 = vmatpush.bf16.msra.mxu0 %v515
    %549 = vmatpush.bf16.msra.mxu0 %v514
    %550 = vmatpush.bf16.msra.mxu0 %v513
    %551 = vmatpush.bf16.msra.mxu0 %v512
    %552 = vmatmul.bf16.gmra.mxu0 %v521
    %v553 = vpop.f32.mrf.mxu0
    %v554 = vadd.f32 0.0, %v553
    %v555 = vpop.f32.mrf.mxu0
    %v556 = vadd.f32 0.0, %v555
    %557 = vmatmul.bf16.gmra.mxu0 %v524
    %v558 = vpop.f32.mrf.mxu0
    %v559 = vadd.f32 0.0, %v558
    %v560 = vpop.f32.mrf.mxu0
    %v561 = vadd.f32 0.0, %v560
    %562 = vmatmul.bf16.gmra.mxu0 %v527
    %v563 = vpop.f32.mrf.mxu0
    %v564 = vadd.f32 0.0, %v563
    %v565 = vpop.f32.mrf.mxu0
    %v566 = vadd.f32 0.0, %v565
    %567 = vmatmul.bf16.gmra.mxu0 %v530
    %v568 = vpop.f32.mrf.mxu0
    %v569 = vadd.f32 0.0, %v568
    %v570 = vpop.f32.mrf.mxu0
    %v571 = vadd.f32 0.0, %v570
    %572 = vmatmul.bf16.gmra.mxu0 %v533
    %v573 = vpop.f32.mrf.mxu0
    %v574 = vadd.f32 0.0, %v573
    %v575 = vpop.f32.mrf.mxu0
    %v576 = vadd.f32 0.0, %v575
    %577 = vmatmul.bf16.gmra.mxu0 %v536
    %v578 = vpop.f32.mrf.mxu0
    %v579 = vadd.f32 0.0, %v578
    %v580 = vpop.f32.mrf.mxu0
    %v581 = vadd.f32 0.0, %v580
    %582 = vmatmul.bf16.gmra.mxu0 %v539
    %v583 = vpop.f32.mrf.mxu0
    %v584 = vadd.f32 0.0, %v583
    %v585 = vpop.f32.mrf.mxu0
    %v586 = vadd.f32 0.0, %v585
    %587 = vmatmul.bf16.gmra.mxu0 %v542
    %v588 = vpop.f32.mrf.mxu0
    %v589 = vadd.f32 0.0, %v588
    %v590 = vpop.f32.mrf.mxu0
    %v591 = vadd.f32 0.0, %v590
    %592 = vdwg.mxu0
    %v593 = vld [vmem:[%s1] sm:$0xff]
    %v594 = vld [vmem:[%s1 + $0x8] sm:$0xff]
    %v595 = vld [vmem:[%s1 + $0x10] sm:$0xff]
    %v596 = vld [vmem:[%s1 + $0x18] sm:$0xff]
    %v597 = vld [vmem:[%s1 + $0x20] sm:$0xff]
    %v598 = vld [vmem:[%s1 + $0x28] sm:$0xff]
    %v599 = vld [vmem:[%s1 + $0x30] sm:$0xff]
    %v600 = vld [vmem:[%s1 + $0x38] sm:$0xff]
    %v601 = vld [vmem:[%s1 + $0x40] sm:$0xff]
    %v602 = vld [vmem:[%s1 + $0x48] sm:$0xff]
    %v603 = vld [vmem:[%s1 + $0x50] sm:$0xff]
    %v604 = vld [vmem:[%s1 + $0x58] sm:$0xff]
    %v605 = vld [vmem:[%s1 + $0x60] sm:$0xff]
    %v606 = vld [vmem:[%s1 + $0x68] sm:$0xff]
    %v607 = vld [vmem:[%s1 + $0x70] sm:$0xff]
    %v608 = vld [vmem:[%s1 + $0x78] sm:$0xff]
    %610 = vset.pattern.permute.xlu0 0
    %611 = vperm.xlu0 %610, %v593
    %v612 = vpop.permute.xlu0 %611
    %615 = vset.pattern.permute.xlu0 0
    %616 = vperm.xlu0 %615, %v594
    %v617 = vpop.permute.xlu0 %616
    %620 = vset.pattern.permute.xlu0 0
    %621 = vperm.xlu0 %620, %v595
    %v622 = vpop.permute.xlu0 %621
    %625 = vset.pattern.permute.xlu0 0
    %626 = vperm.xlu0 %625, %v596
    %v627 = vpop.permute.xlu0 %626
    %630 = vset.pattern.permute.xlu0 0
    %631 = vperm.xlu0 %630, %v597
    %v632 = vpop.permute.xlu0 %631
    %635 = vset.pattern.permute.xlu0 0
    %636 = vperm.xlu0 %635, %v598
    %v637 = vpop.permute.xlu0 %636
    %640 = vset.pattern.permute.xlu0 0
    %641 = vperm.xlu0 %640, %v599
    %v642 = vpop.permute.xlu0 %641
    %645 = vset.pattern.permute.xlu0 0
    %646 = vperm.xlu0 %645, %v600
    %v647 = vpop.permute.xlu0 %646
    %650 = vset.pattern.permute.xlu0 0
    %651 = vperm.xlu0 %650, %v601
    %v652 = vpop.permute.xlu0 %651
    %655 = vset.pattern.permute.xlu0 0
    %656 = vperm.xlu0 %655, %v602
    %v657 = vpop.permute.xlu0 %656
    %660 = vset.pattern.permute.xlu0 0
    %661 = vperm.xlu0 %660, %v603
    %v662 = vpop.permute.xlu0 %661
    %665 = vset.pattern.permute.xlu0 0
    %666 = vperm.xlu0 %665, %v604
    %v667 = vpop.permute.xlu0 %666
    %670 = vset.pattern.permute.xlu0 0
    %671 = vperm.xlu0 %670, %v605
    %v672 = vpop.permute.xlu0 %671
    %675 = vset.pattern.permute.xlu0 0
    %676 = vperm.xlu0 %675, %v606
    %v677 = vpop.permute.xlu0 %676
    %680 = vset.pattern.permute.xlu0 0
    %681 = vperm.xlu0 %680, %v607
    %v682 = vpop.permute.xlu0 %681
    %685 = vset.pattern.permute.xlu0 0
    %686 = vperm.xlu0 %685, %v608
    %v687 = vpop.permute.xlu0 %686
    %v689 = vmul.f32 %v612, %v554
    %v690 = vmul.f32 %v617, %v556
    %v691 = vmul.f32 %v622, %v559
    %v692 = vmul.f32 %v627, %v561
    %v693 = vmul.f32 %v632, %v564
    %v694 = vmul.f32 %v637, %v566
    %v695 = vmul.f32 %v642, %v569
    %v696 = vmul.f32 %v647, %v571
    %v697 = vmul.f32 %v652, %v574
    %v698 = vmul.f32 %v657, %v576
    %v699 = vmul.f32 %v662, %v579
    %v700 = vmul.f32 %v667, %v581
    %v701 = vmul.f32 %v672, %v584
    %v702 = vmul.f32 %v677, %v586
    %v703 = vmul.f32 %v682, %v589
    %v704 = vmul.f32 %v687, %v591
    %v705 = vpack.c.bf16 %v689, %v689
    %v706 = vpack.c.bf16 %v690, %v690
    %v707 = vpack.c.bf16 %v691, %v691
    %v708 = vpack.c.bf16 %v692, %v692
    %v709 = vpack.c.bf16 %v693, %v693
    %v710 = vpack.c.bf16 %v694, %v694
    %v711 = vpack.c.bf16 %v695, %v695
    %v712 = vpack.c.bf16 %v696, %v696
    %v713 = vpack.c.bf16 %v697, %v697
    %v714 = vpack.c.bf16 %v698, %v698
    %v715 = vpack.c.bf16 %v699, %v699
    %v716 = vpack.c.bf16 %v700, %v700
    %v717 = vpack.c.bf16 %v701, %v701
    %v718 = vpack.c.bf16 %v702, %v702
    %v719 = vpack.c.bf16 %v703, %v703
    %v720 = vpack.c.bf16 %v704, %v704
    %vm721 = vcmask 519168
    %722 = vst.msk [vmem:[%s5] sm:$0xf] %vm721, %v705
    %723 = vst.msk [vmem:[%s5 + $0x4] sm:$0xf] %vm721, %v706
    %724 = vst.msk [vmem:[%s5 + $0x8] sm:$0xf] %vm721, %v707
    %725 = vst.msk [vmem:[%s5 + $0xc] sm:$0xf] %vm721, %v708
    %726 = vst.msk [vmem:[%s5 + $0x10] sm:$0xf] %vm721, %v709
    %727 = vst.msk [vmem:[%s5 + $0x14] sm:$0xf] %vm721, %v710
    %728 = vst.msk [vmem:[%s5 + $0x18] sm:$0xf] %vm721, %v711
    %729 = vst.msk [vmem:[%s5 + $0x1c] sm:$0xf] %vm721, %v712
    %730 = vst.msk [vmem:[%s5 + $0x20] sm:$0xf] %vm721, %v713
    %731 = vst.msk [vmem:[%s5 + $0x24] sm:$0xf] %vm721, %v714
    %732 = vst.msk [vmem:[%s5 + $0x28] sm:$0xf] %vm721, %v715
    %733 = vst.msk [vmem:[%s5 + $0x2c] sm:$0xf] %vm721, %v716
    %734 = vst.msk [vmem:[%s5 + $0x30] sm:$0xf] %vm721, %v717
    %735 = vst.msk [vmem:[%s5 + $0x34] sm:$0xf] %vm721, %v718
    %736 = vst.msk [vmem:[%s5 + $0x38] sm:$0xf] %vm721, %v719
    %737 = vst.msk [vmem:[%s5 + $0x3c] sm:$0xf] %vm721, %v720
    // Predicated region
    $region34: #{outer_product_mean.3} parent=1 // pred_check
      _
    $region35: #{outer_product_mean.3} parent=1 // pred_check_branch
      %739 = sbr.rel (0) target = $region37
    $region36: #{outer_product_mean.3} parent=1 // pred_region
      _
    $region37: #{outer_product_mean.3} parent=1 // pred_fallthru
      _
    // Predicated region
    $region38: #{outer_product_mean.3} parent=1 // pred_check
      _
    $region39: #{outer_product_mean.3} parent=1 // pred_check_branch
      %741 = sbr.rel (0) target = $region41
    $region40: #{outer_product_mean.3} parent=1 // pred_region
      _
    $region41: #{outer_product_mean.3} parent=1 // pred_fallthru
      _
    %742 = vsyncpa [#allocation3], 1
    %743 = vsyncpa [#allocation5], 1

// kernel: outer_product_mean.5
$region0: #{outer_product_mean.5}
  #allocation0 [shape = 'u32[]', space=smem, size = 0x4, offset = 0x4, fixed_abs, tag = 'smem constant byte address 0x4 - core index']
  #allocation1 [shape = 'u32[72,128]{1,0:T(1,128)}', space=vmem, size = 0x9000, scoped, tag = 'internal scratch']
  #allocation2 [shape = 'bf16[256,128]{1,0:T(8,128)(2,1)}', space=vmem, size = 0x10000, scoped, tag = 'scratch operand']
  %s0 = inlined_call_operand.vmem [shape: bf16[16,8,32], index: 0, kind: input, shape index: {}]
  %s1 = inlined_call_operand.vmem [shape: bf16[16,256], index: 1, kind: input, shape index: {}]
  %s2 = inlined_call_operand.vmem [shape: bf16[32,4096], index: 2, kind: input, shape index: {}]
  %s3 = inlined_call_operand.vmem [shape: f32[16,16,1], index: 3, kind: input, shape index: {}]
  %s4 = inlined_call_operand.vmem [shape: f32[1,128], index: 4, kind: input, shape index: {}]
  %s5 = inlined_call_operand.hbm [shape: f32[16,16,128], index: 5, kind: output, shape index: {}]
  %s6 = sld [smem:[#allocation0]]
  $region53: #{outer_product_mean.5} parent=0
    _
  %s8 = ssub.s32 1, %s6
  %s9 = scalar_select 0, %s8, %s6
  $region1: #{outer_product_mean.5} parent=0
    #allocation3 [shape = 'u8[16384]{0}', space=vmem, size = 0x4000, scoped, tag = 'output window, operand 0']
    #allocation4 [shape = 's32[2]{0}', space=sflag, size = 0x8, scoped, tag = 'scoped memory for outer_product_mean.5']
    %10 = vsyncpa [#allocation4], 0
    %s11 = scalar_lea.sflag [#allocation4], 1
    %12 = vsyncpa %s11, 0
    loop: start=0, step=1, limit=18
    $region2: #{outer_product_mean.5} parent=1 // loop_pre_header
      _
    $region3: #{outer_product_mean.5} parent=1 // loop_header
      %s14 = sphi 0, %s18
      %p15 = scmp.ge.s32.totalorder %s14, 18
      %s24 = sphi 0, %s26
      %s27 = sphi 0, %s24
      %s28 = sphi 0, %s27
      %s44 = sphi 0, %s28
      %s48 = sphi 0, %s48
      %s50 = sphi 0, %s48
      %s51 = sphi 0, %s50
      %s65 = sphi 0, %s51
      %s69 = sphi 0, %s69
      %s71 = sphi 0, %s69
      %s72 = sphi 0, %s71
      %s86 = sphi 0, %s72
      %s92 = sphi 0, %s94
      %s95 = sphi 0, %s92
      %s96 = sphi 0, %s95
      %s112 = sphi 0, %s96
      %s116 = sphi 0, %s116
      %s118 = sphi 0, %s116
      %s119 = sphi 0, %s118
      %s133 = sphi 0, %s119
      %s139 = sphi 0, %s141
      %s142 = sphi 0, %s139
      %s143 = sphi 0, %s142
      %s159 = sphi 0, %s143
    $region4: #{outer_product_mean.5} parent=1 // loop_header_branch
      %17 = sbr.rel (%p15) target = $region8
    $region5: #{outer_product_mean.5} parent=1 // loop_body
      %s19 = ssub.s32 %s14, 1
      %s20 = ssub.s32 %s14, 2
      %s21 = sadd.s32 %s14, 1
      %s22 = ssub.s32 %s14, %s21
      %p23 = scmp.eq.s32.totalorder %s22, 0
      %s25 = sadd.s32 %s24, 1
      %s26 = scalar_select %p23, %s24, %s25
      %p29 = pneg %p23
      %p30 = scmp.eq.s32.totalorder %s14, 15
      %p31 = por %p29, %p30
      %p32 = scmp.ne.s32.totalorder %s24, %s27
      %p33 = scmp.eq.s32.totalorder %s14, 0
      %p34 = por %p32, %p33
      %p35 = scmp.ne.s32.totalorder %s24, %s27
      %p36 = scmp.eq.s32.totalorder %s19, 15
      %p37 = por %p35, %p36
      %p38 = scmp.ne.s32.totalorder %s27, %s28
      %p39 = scmp.eq.s32.totalorder %s19, 0
      %p40 = por %p38, %p39
      %p41 = scmp.ne.s32.totalorder %s27, %s28
      %p42 = scmp.eq.s32.totalorder %s20, 15
      %p43 = por %p41, %p42
      %p45 = scmp.ne.s32.totalorder %s28, %s44
      %p46 = scmp.eq.s32.totalorder %s20, 0
      %p47 = por %p45, %p46
      %s49 = sadd.s32 %s48, 1
      %p52 = scmp.eq.s32.totalorder %s14, 15
      %p53 = scmp.ne.s32.totalorder %s48, %s50
      %p54 = scmp.eq.s32.totalorder %s14, 0
      %p55 = por %p53, %p54
      %p56 = scmp.ne.s32.totalorder %s48, %s50
      %p57 = scmp.eq.s32.totalorder %s19, 15
      %p58 = por %p56, %p57
      %p59 = scmp.ne.s32.totalorder %s50, %s51
      %p60 = scmp.eq.s32.totalorder %s19, 0
      %p61 = por %p59, %p60
      %p62 = scmp.ne.s32.totalorder %s50, %s51
      %p63 = scmp.eq.s32.totalorder %s20, 15
      %p64 = por %p62, %p63
      %p66 = scmp.ne.s32.totalorder %s51, %s65
      %p67 = scmp.eq.s32.totalorder %s20, 0
      %p68 = por %p66, %p67
      %s70 = sadd.s32 %s69, 1
      %p73 = scmp.eq.s32.totalorder %s14, 15
      %p74 = scmp.ne.s32.totalorder %s69, %s71
      %p75 = scmp.eq.s32.totalorder %s14, 0
      %p76 = por %p74, %p75
      %p77 = scmp.ne.s32.totalorder %s69, %s71
      %p78 = scmp.eq.s32.totalorder %s19, 15
      %p79 = por %p77, %p78
      %p80 = scmp.ne.s32.totalorder %s71, %s72
      %p81 = scmp.eq.s32.totalorder %s19, 0
      %p82 = por %p80, %p81
      %p83 = scmp.ne.s32.totalorder %s71, %s72
      %p84 = scmp.eq.s32.totalorder %s20, 15
      %p85 = por %p83, %p84
      %p87 = scmp.ne.s32.totalorder %s72, %s86
      %p88 = scmp.eq.s32.totalorder %s20, 0
      %p89 = por %p87, %p88
      %s90 = ssub.s32 %s14, %s21
      %p91 = scmp.eq.s32.totalorder %s90, 0
      %s93 = sadd.s32 %s92, 1
      %s94 = scalar_select %p91, %s92, %s93
      %p97 = pneg %p91
      %p98 = scmp.eq.s32.totalorder %s14, 15
      %p99 = por %p97, %p98
      %p100 = scmp.ne.s32.totalorder %s92, %s95
      %p101 = scmp.eq.s32.totalorder %s14, 0
      %p102 = por %p100, %p101
      %p103 = scmp.ne.s32.totalorder %s92, %s95
      %p104 = scmp.eq.s32.totalorder %s19, 15
      %p105 = por %p103, %p104
      %p106 = scmp.ne.s32.totalorder %s95, %s96
      %p107 = scmp.eq.s32.totalorder %s19, 0
      %p108 = por %p106, %p107
      %p109 = scmp.ne.s32.totalorder %s95, %s96
      %p110 = scmp.eq.s32.totalorder %s20, 15
      %p111 = por %p109, %p110
      %p113 = scmp.ne.s32.totalorder %s96, %s112
      %p114 = scmp.eq.s32.totalorder %s20, 0
      %p115 = por %p113, %p114
      %s117 = sadd.s32 %s116, 1
      %p120 = scmp.eq.s32.totalorder %s14, 15
      %p121 = scmp.ne.s32.totalorder %s116, %s118
      %p122 = scmp.eq.s32.totalorder %s14, 0
      %p123 = por %p121, %p122
      %p124 = scmp.ne.s32.totalorder %s116, %s118
      %p125 = scmp.eq.s32.totalorder %s19, 15
      %p126 = por %p124, %p125
      %p127 = scmp.ne.s32.totalorder %s118, %s119
      %p128 = scmp.eq.s32.totalorder %s19, 0
      %p129 = por %p127, %p128
      %p130 = scmp.ne.s32.totalorder %s118, %s119
      %p131 = scmp.eq.s32.totalorder %s20, 15
      %p132 = por %p130, %p131
      %p134 = scmp.ne.s32.totalorder %s119, %s133
      %p135 = scmp.eq.s32.totalorder %s20, 0
      %p136 = por %p134, %p135
      %s137 = ssub.s32 %s14, %s21
      %p138 = scmp.eq.s32.totalorder %s137, 0
      %s140 = sadd.s32 %s139, 1
      %s141 = scalar_select %p138, %s139, %s140
      %p144 = pneg %p138
      %p145 = scmp.eq.s32.totalorder %s14, 15
      %p146 = por %p144, %p145
      %p147 = scmp.ne.s32.totalorder %s139, %s142
      %p148 = scmp.eq.s32.totalorder %s14, 0
      %p149 = por %p147, %p148
      %p150 = scmp.ne.s32.totalorder %s139, %s142
      %p151 = scmp.eq.s32.totalorder %s19, 15
      %p152 = por %p150, %p151
      %p153 = scmp.ne.s32.totalorder %s142, %s143
      %p154 = scmp.eq.s32.totalorder %s19, 0
      %p155 = por %p153, %p154
      %p156 = scmp.ne.s32.totalorder %s142, %s143
      %p157 = scmp.eq.s32.totalorder %s20, 15
      %p158 = por %p156, %p157
      %p160 = scmp.ne.s32.totalorder %s143, %s159
      %p161 = scmp.eq.s32.totalorder %s20, 0
      %p162 = por %p160, %p161
      %p163 = scmp.le.s32.totalorder 1, %s14
      %p164 = scmp.lt.s32.totalorder %s14, 17
      %p165 = pnand %p163, %p164
      %p166 = pneg %p165
      // Predicated region
      $region9: #{outer_product_mean.5} parent=5 // pred_check
        _
      $region10: #{outer_product_mean.5} parent=5 // pred_check_branch
        %168 = sbr.rel (%p165) target = $region12
      $region11: #{outer_product_mean.5} parent=5 // pred_region
        %s169 = ssub.s32 %s14, 1
        // Predicated region
        $region13: #{outer_product_mean.5} parent=11 // pred_check
          %p170 = pneg %p61
        $region14: #{outer_product_mean.5} parent=11 // pred_check_branch
          %172 = sbr.rel (%p170) target = $region16
        $region15: #{outer_product_mean.5} parent=11 // pred_region
          _
        $region16: #{outer_product_mean.5} parent=11 // pred_fallthru
          _
        // Predicated region
        $region17: #{outer_product_mean.5} parent=11 // pred_check
          %p173 = pneg %p82
        $region18: #{outer_product_mean.5} parent=11 // pred_check_branch
          %175 = sbr.rel (%p173) target = $region20
        $region19: #{outer_product_mean.5} parent=11 // pred_region
          _
        $region20: #{outer_product_mean.5} parent=11 // pred_fallthru
          _
        // Predicated region
        $region21: #{outer_product_mean.5} parent=11 // pred_check
          %p176 = pneg %p129
        $region22: #{outer_product_mean.5} parent=11 // pred_check_branch
          %178 = sbr.rel (%p176) target = $region24
        $region23: #{outer_product_mean.5} parent=11 // pred_region
          _
        $region24: #{outer_product_mean.5} parent=11 // pred_fallthru
          _
      $region12: #{outer_product_mean.5} parent=5 // pred_fallthru
        _
      %p179 = scmp.lt.s32.totalorder %s14, 16
      // Predicated region
      $region25: #{outer_product_mean.5} parent=5 // pred_check
        %p180 = pneg %p179
      $region26: #{outer_product_mean.5} parent=5 // pred_check_branch
        %182 = sbr.rel (%p180) target = $region28
      $region27: #{outer_product_mean.5} parent=5 // pred_region
        // Predicated region
        $region29: #{outer_product_mean.5} parent=27 // pred_check
          %p183 = pneg %p34
        $region30: #{outer_product_mean.5} parent=27 // pred_check_branch
          %185 = sbr.rel (%p183) target = $region32
        $region31: #{outer_product_mean.5} parent=27 // pred_region
          %p186 = scmp.lt.s32.totalorder %s14, 15
          %s187 = scalar_select %p186, %s14, 15
          %s188 = smul.addr %s187, 4
          %s189 = scalar_lea.vmem %s0, %s188
        $region32: #{outer_product_mean.5} parent=27 // pred_fallthru
          _
        // Predicated region
        $region33: #{outer_product_mean.5} parent=27 // pred_check
          %p190 = pneg %p102
        $region34: #{outer_product_mean.5} parent=27 // pred_check_branch
          %192 = sbr.rel (%p190) target = $region36
        $region35: #{outer_product_mean.5} parent=27 // pred_region
          %p193 = scmp.lt.s32.totalorder %s14, 15
          %s194 = scalar_select %p193, %s14, 15
          %s195 = smul.addr %s194, 2
          %s196 = smul.addr %s195, 8
          %s197 = scalar_lea.vmem %s3, %s196
        $region36: #{outer_product_mean.5} parent=27 // pred_fallthru
          _
      $region28: #{outer_product_mean.5} parent=5 // pred_fallthru
        _
      %p198 = scmp.le.s32.totalorder 1, %s14
      %p199 = scmp.lt.s32.totalorder %s14, 17
      %p200 = pnand %p198, %p199
      %p201 = pneg %p200
      // Predicated region
      $region37: #{outer_product_mean.5} parent=5 // pred_check
        _
      $region38: #{outer_product_mean.5} parent=5 // pred_check_branch
        %203 = sbr.rel (%p200) target = $region40
      $region39: #{outer_product_mean.5} parent=5 // pred_region
        %s204 = ssub.s32 %s14, 1
        %p205 = scmp.lt.s32.totalorder %s19, 15
        %s206 = scalar_select %p205, %s19, 15
        %s207 = smul.addr %s206, 4
        %s208 = scalar_lea.vmem %s0, %s207
        %p209 = pneg %p40
        %p210 = pneg %p37
        %p211 = pneg %p61
        %p212 = pneg %p58
        %p213 = pneg %p82
        %p214 = pneg %p79
        %p215 = scmp.lt.s32.totalorder %s19, 15
        %s216 = scalar_select %p215, %s19, 15
        %s217 = smul.addr %s216, 2
        %s218 = smul.addr %s217, 8
        %s219 = scalar_lea.vmem %s3, %s218
        %p220 = pneg %p108
        %p221 = pneg %p105
        %p222 = pneg %p129
        %p223 = pneg %p126
        %p224 = pneg %p155
        %p225 = pneg %p152
        %s226 = sand.u32 %s142, 1
        %s227 = scalar_lea.sflag [#allocation4], %s226
        %s228 = sand.u32 %s142, 1
        %s229 = smul.addr %s228, 16
        %s230 = scalar_lea.vmem [#allocation3], %s229
        %p231 = scmp.lt.s32.totalorder %s19, 15
        %s232 = scalar_select %p231, %s19, 15
        %s233 = smul.addr %s232, 4
        %s234 = scalar_lea.vmem %s0, %s233
        %p235 = scmp.lt.s32.totalorder %s19, 15
        %s236 = scalar_select %p235, %s19, 15
        %s237 = smul.addr %s236, 2
        %s238 = smul.addr %s237, 8
        %s239 = scalar_lea.vmem %s3, %s238
        %v241 = vld [vmem:[%s234] sm:$0xf]
        %v242 = vld [vmem:[%s2] sm:$0xff]
        %v243 = vld [vmem:[%s2 + $0x8] sm:$0xff]
        %v244 = vld [vmem:[%s2 + $0x10] sm:$0xff]
        %v245 = vld [vmem:[%s2 + $0x18] sm:$0xff]
        %v246 = vld [vmem:[%s2 + $0x20] sm:$0xff]
        %v247 = vld [vmem:[%s2 + $0x28] sm:$0xff]
        %v248 = vld [vmem:[%s2 + $0x30] sm:$0xff]
        %v249 = vld [vmem:[%s2 + $0x38] sm:$0xff]
        %v250 = vld [vmem:[%s2 + $0x40] sm:$0xff]
        %v251 = vld [vmem:[%s2 + $0x48] sm:$0xff]
        %v252 = vld [vmem:[%s2 + $0x50] sm:$0xff]
        %v253 = vld [vmem:[%s2 + $0x58] sm:$0xff]
        %v254 = vld [vmem:[%s2 + $0x60] sm:$0xff]
        %v255 = vld [vmem:[%s2 + $0x68] sm:$0xff]
        %v256 = vld [vmem:[%s2 + $0x70] sm:$0xff]
        %v257 = vld [vmem:[%s2 + $0x78] sm:$0xff]
        %v258 = vld [vmem:[%s2 + $0x80] sm:$0xff]
        %v259 = vld [vmem:[%s2 + $0x88] sm:$0xff]
        %v260 = vld [vmem:[%s2 + $0x90] sm:$0xff]
        %v261 = vld [vmem:[%s2 + $0x98] sm:$0xff]
        %v262 = vld [vmem:[%s2 + $0xa0] sm:$0xff]
        %v263 = vld [vmem:[%s2 + $0xa8] sm:$0xff]
        %v264 = vld [vmem:[%s2 + $0xb0] sm:$0xff]
        %v265 = vld [vmem:[%s2 + $0xb8] sm:$0xff]
        %v266 = vld [vmem:[%s2 + $0xc0] sm:$0xff]
        %v267 = vld [vmem:[%s2 + $0xc8] sm:$0xff]
        %v268 = vld [vmem:[%s2 + $0xd0] sm:$0xff]
        %v269 = vld [vmem:[%s2 + $0xd8] sm:$0xff]
        %v270 = vld [vmem:[%s2 + $0xe0] sm:$0xff]
        %v271 = vld [vmem:[%s2 + $0xe8] sm:$0xff]
        %v272 = vld [vmem:[%s2 + $0xf0] sm:$0xff]
        %v273 = vld [vmem:[%s2 + $0xf8] sm:$0xff]
        %v274 = vld [vmem:[%s2 + $0x100] sm:$0xff]
        %v275 = vld [vmem:[%s2 + $0x108] sm:$0xff]
        %v276 = vld [vmem:[%s2 + $0x110] sm:$0xff]
        %v277 = vld [vmem:[%s2 + $0x118] sm:$0xff]
        %v278 = vld [vmem:[%s2 + $0x120] sm:$0xff]
        %v279 = vld [vmem:[%s2 + $0x128] sm:$0xff]
        %v280 = vld [vmem:[%s2 + $0x130] sm:$0xff]
        %v281 = vld [vmem:[%s2 + $0x138] sm:$0xff]
        %v282 = vld [vmem:[%s2 + $0x140] sm:$0xff]
        %v283 = vld [vmem:[%s2 + $0x148] sm:$0xff]
        %v284 = vld [vmem:[%s2 + $0x150] sm:$0xff]
        %v285 = vld [vmem:[%s2 + $0x158] sm:$0xff]
        %v286 = vld [vmem:[%s2 + $0x160] sm:$0xff]
        %v287 = vld [vmem:[%s2 + $0x168] sm:$0xff]
        %v288 = vld [vmem:[%s2 + $0x170] sm:$0xff]
        %v289 = vld [vmem:[%s2 + $0x178] sm:$0xff]
        %v290 = vld [vmem:[%s2 + $0x180] sm:$0xff]
        %v291 = vld [vmem:[%s2 + $0x188] sm:$0xff]
        %v292 = vld [vmem:[%s2 + $0x190] sm:$0xff]
        %v293 = vld [vmem:[%s2 + $0x198] sm:$0xff]
        %v294 = vld [vmem:[%s2 + $0x1a0] sm:$0xff]
        %v295 = vld [vmem:[%s2 + $0x1a8] sm:$0xff]
        %v296 = vld [vmem:[%s2 + $0x1b0] sm:$0xff]
        %v297 = vld [vmem:[%s2 + $0x1b8] sm:$0xff]
        %v298 = vld [vmem:[%s2 + $0x1c0] sm:$0xff]
        %v299 = vld [vmem:[%s2 + $0x1c8] sm:$0xff]
        %v300 = vld [vmem:[%s2 + $0x1d0] sm:$0xff]
        %v301 = vld [vmem:[%s2 + $0x1d8] sm:$0xff]
        %v302 = vld [vmem:[%s2 + $0x1e0] sm:$0xff]
        %v303 = vld [vmem:[%s2 + $0x1e8] sm:$0xff]
        %v304 = vld [vmem:[%s2 + $0x1f0] sm:$0xff]
        %v305 = vld [vmem:[%s2 + $0x1f8] sm:$0xff]
        %v370 = vunpack.c.l.b16 %v242
        %v371 = vunpack.c.h.b16 %v242
        %v372 = vunpack.c.l.b16 %v243
        %v373 = vunpack.c.h.b16 %v243
        %v374 = vunpack.c.l.b16 %v244
        %v375 = vunpack.c.h.b16 %v244
        %v376 = vunpack.c.l.b16 %v245
        %v377 = vunpack.c.h.b16 %v245
        %v378 = vunpack.c.l.b16 %v246
        %v379 = vunpack.c.h.b16 %v246
        %v380 = vunpack.c.l.b16 %v247
        %v381 = vunpack.c.h.b16 %v247
        %v382 = vunpack.c.l.b16 %v248
        %v383 = vunpack.c.h.b16 %v248
        %v384 = vunpack.c.l.b16 %v249
        %v385 = vunpack.c.h.b16 %v249
        %v386 = vunpack.c.l.b16 %v250
        %v387 = vunpack.c.h.b16 %v250
        %v388 = vunpack.c.l.b16 %v251
        %v389 = vunpack.c.h.b16 %v251
        %v390 = vunpack.c.l.b16 %v252
        %v391 = vunpack.c.h.b16 %v252
        %v392 = vunpack.c.l.b16 %v253
        %v393 = vunpack.c.h.b16 %v253
        %v394 = vunpack.c.l.b16 %v254
        %v395 = vunpack.c.h.b16 %v254
        %v396 = vunpack.c.l.b16 %v255
        %v397 = vunpack.c.h.b16 %v255
        %v398 = vunpack.c.l.b16 %v256
        %v399 = vunpack.c.h.b16 %v256
        %v400 = vunpack.c.l.b16 %v257
        %v401 = vunpack.c.h.b16 %v257
        %v402 = vunpack.c.l.b16 %v258
        %v403 = vunpack.c.h.b16 %v258
        %v404 = vunpack.c.l.b16 %v259
        %v405 = vunpack.c.h.b16 %v259
        %v406 = vunpack.c.l.b16 %v260
        %v407 = vunpack.c.h.b16 %v260
        %v408 = vunpack.c.l.b16 %v261
        %v409 = vunpack.c.h.b16 %v261
        %v410 = vunpack.c.l.b16 %v262
        %v411 = vunpack.c.h.b16 %v262
        %v412 = vunpack.c.l.b16 %v263
        %v413 = vunpack.c.h.b16 %v263
        %v414 = vunpack.c.l.b16 %v264
        %v415 = vunpack.c.h.b16 %v264
        %v416 = vunpack.c.l.b16 %v265
        %v417 = vunpack.c.h.b16 %v265
        %v418 = vunpack.c.l.b16 %v266
        %v419 = vunpack.c.h.b16 %v266
        %v420 = vunpack.c.l.b16 %v267
        %v421 = vunpack.c.h.b16 %v267
        %v422 = vunpack.c.l.b16 %v268
        %v423 = vunpack.c.h.b16 %v268
        %v424 = vunpack.c.l.b16 %v269
        %v425 = vunpack.c.h.b16 %v269
        %v426 = vunpack.c.l.b16 %v270
        %v427 = vunpack.c.h.b16 %v270
        %v428 = vunpack.c.l.b16 %v271
        %v429 = vunpack.c.h.b16 %v271
        %v430 = vunpack.c.l.b16 %v272
        %v431 = vunpack.c.h.b16 %v272
        %v432 = vunpack.c.l.b16 %v273
        %v433 = vunpack.c.h.b16 %v273
        %v434 = vunpack.c.l.b16 %v274
        %v435 = vunpack.c.h.b16 %v274
        %v436 = vunpack.c.l.b16 %v275
        %v437 = vunpack.c.h.b16 %v275
        %v438 = vunpack.c.l.b16 %v276
        %v439 = vunpack.c.h.b16 %v276
        %v440 = vunpack.c.l.b16 %v277
        %v441 = vunpack.c.h.b16 %v277
        %v442 = vunpack.c.l.b16 %v278
        %v443 = vunpack.c.h.b16 %v278
        %v444 = vunpack.c.l.b16 %v279
        %v445 = vunpack.c.h.b16 %v279
        %v446 = vunpack.c.l.b16 %v280
        %v447 = vunpack.c.h.b16 %v280
        %v448 = vunpack.c.l.b16 %v281
        %v449 = vunpack.c.h.b16 %v281
        %v450 = vunpack.c.l.b16 %v282
        %v451 = vunpack.c.h.b16 %v282
        %v452 = vunpack.c.l.b16 %v283
        %v453 = vunpack.c.h.b16 %v283
        %v454 = vunpack.c.l.b16 %v284
        %v455 = vunpack.c.h.b16 %v284
        %v456 = vunpack.c.l.b16 %v285
        %v457 = vunpack.c.h.b16 %v285
        %v458 = vunpack.c.l.b16 %v286
        %v459 = vunpack.c.h.b16 %v286
        %v460 = vunpack.c.l.b16 %v287
        %v461 = vunpack.c.h.b16 %v287
        %v462 = vunpack.c.l.b16 %v288
        %v463 = vunpack.c.h.b16 %v288
        %v464 = vunpack.c.l.b16 %v289
        %v465 = vunpack.c.h.b16 %v289
        %v466 = vunpack.c.l.b16 %v290
        %v467 = vunpack.c.h.b16 %v290
        %v468 = vunpack.c.l.b16 %v291
        %v469 = vunpack.c.h.b16 %v291
        %v470 = vunpack.c.l.b16 %v292
        %v471 = vunpack.c.h.b16 %v292
        %v472 = vunpack.c.l.b16 %v293
        %v473 = vunpack.c.h.b16 %v293
        %v474 = vunpack.c.l.b16 %v294
        %v475 = vunpack.c.h.b16 %v294
        %v476 = vunpack.c.l.b16 %v295
        %v477 = vunpack.c.h.b16 %v295
        %v478 = vunpack.c.l.b16 %v296
        %v479 = vunpack.c.h.b16 %v296
        %v480 = vunpack.c.l.b16 %v297
        %v481 = vunpack.c.h.b16 %v297
        %v482 = vunpack.c.l.b16 %v298
        %v483 = vunpack.c.h.b16 %v298
        %v484 = vunpack.c.l.b16 %v299
        %v485 = vunpack.c.h.b16 %v299
        %v486 = vunpack.c.l.b16 %v300
        %v487 = vunpack.c.h.b16 %v300
        %v488 = vunpack.c.l.b16 %v301
        %v489 = vunpack.c.h.b16 %v301
        %v490 = vunpack.c.l.b16 %v302
        %v491 = vunpack.c.h.b16 %v302
        %v492 = vunpack.c.l.b16 %v303
        %v493 = vunpack.c.h.b16 %v303
        %v494 = vunpack.c.l.b16 %v304
        %v495 = vunpack.c.h.b16 %v304
        %v496 = vunpack.c.l.b16 %v305
        %v497 = vunpack.c.h.b16 %v305
        %v498 = vpack.c.b16 %v402, %v370
        %v499 = vpack.c.b16 %v403, %v371
        %v500 = vpack.c.b16 %v404, %v372
        %v501 = vpack.c.b16 %v405, %v373
        %v502 = vpack.c.b16 %v406, %v374
        %v503 = vpack.c.b16 %v407, %v375
        %v504 = vpack.c.b16 %v408, %v376
        %v505 = vpack.c.b16 %v409, %v377
        %v506 = vpack.c.b16 %v410, %v378
        %v507 = vpack.c.b16 %v411, %v379
        %v508 = vpack.c.b16 %v412, %v380
        %v509 = vpack.c.b16 %v413, %v381
        %v510 = vpack.c.b16 %v414, %v382
        %v511 = vpack.c.b16 %v415, %v383
        %v512 = vpack.c.b16 %v416, %v384
        %v513 = vpack.c.b16 %v417, %v385
        %v514 = vpack.c.b16 %v418, %v386
        %v515 = vpack.c.b16 %v419, %v387
        %v516 = vpack.c.b16 %v420, %v388
        %v517 = vpack.c.b16 %v421, %v389
        %v518 = vpack.c.b16 %v422, %v390
        %v519 = vpack.c.b16 %v423, %v391
        %v520 = vpack.c.b16 %v424, %v392
        %v521 = vpack.c.b16 %v425, %v393
        %v522 = vpack.c.b16 %v426, %v394
        %v523 = vpack.c.b16 %v427, %v395
        %v524 = vpack.c.b16 %v428, %v396
        %v525 = vpack.c.b16 %v429, %v397
        %v526 = vpack.c.b16 %v430, %v398
        %v527 = vpack.c.b16 %v431, %v399
        %v528 = vpack.c.b16 %v432, %v400
        %v529 = vpack.c.b16 %v433, %v401
        %v530 = vpack.c.b16 %v466, %v434
        %v531 = vpack.c.b16 %v467, %v435
        %v532 = vpack.c.b16 %v468, %v436
        %v533 = vpack.c.b16 %v469, %v437
        %v534 = vpack.c.b16 %v470, %v438
        %v535 = vpack.c.b16 %v471, %v439
        %v536 = vpack.c.b16 %v472, %v440
        %v537 = vpack.c.b16 %v473, %v441
        %v538 = vpack.c.b16 %v474, %v442
        %v539 = vpack.c.b16 %v475, %v443
        %v540 = vpack.c.b16 %v476, %v444
        %v541 = vpack.c.b16 %v477, %v445
        %v542 = vpack.c.b16 %v478, %v446
        %v543 = vpack.c.b16 %v479, %v447
        %v544 = vpack.c.b16 %v480, %v448
        %v545 = vpack.c.b16 %v481, %v449
        %v546 = vpack.c.b16 %v482, %v450
        %v547 = vpack.c.b16 %v483, %v451
        %v548 = vpack.c.b16 %v484, %v452
        %v549 = vpack.c.b16 %v485, %v453
        %v550 = vpack.c.b16 %v486, %v454
        %v551 = vpack.c.b16 %v487, %v455
        %v552 = vpack.c.b16 %v488, %v456
        %v553 = vpack.c.b16 %v489, %v457
        %v554 = vpack.c.b16 %v490, %v458
        %v555 = vpack.c.b16 %v491, %v459
        %v556 = vpack.c.b16 %v492, %v460
        %v557 = vpack.c.b16 %v493, %v461
        %v558 = vpack.c.b16 %v494, %v462
        %v559 = vpack.c.b16 %v495, %v463
        %v560 = vpack.c.b16 %v496, %v464
        %v561 = vpack.c.b16 %v497, %v465
        %vm626 = vcmask 261120
        %v628 = vsel %vm626, %v241, 0
        %630 = vmatpush.bf16.msra.mxu0 0
        %631 = vmatpush.bf16.msra.mxu0 0
        %632 = vmatpush.bf16.msra.mxu0 0
        %633 = vmatpush.bf16.msra.mxu0 0
        %634 = vmatpush.bf16.msra.mxu0 0
        %635 = vmatpush.bf16.msra.mxu0 0
        %636 = vmatpush.bf16.msra.mxu0 %v530
        %637 = vmatpush.bf16.msra.mxu0 %v498
        %638 = vmatmul.bf16.gmra.mxu0 %v628
        %v639 = vpop.f32.mrf.mxu0
        %v640 = vadd.f32 0.0, %v639
        %v641 = vpop.f32.mrf.mxu0
        %642 = vdwg.mxu0
        %643 = vmatpush.bf16.msra.mxu0 0
        %644 = vmatpush.bf16.msra.mxu0 0
        %645 = vmatpush.bf16.msra.mxu0 0
        %646 = vmatpush.bf16.msra.mxu0 0
        %647 = vmatpush.bf16.msra.mxu0 0
        %648 = vmatpush.bf16.msra.mxu0 0
        %649 = vmatpush.bf16.msra.mxu0 %v531
        %650 = vmatpush.bf16.msra.mxu0 %v499
        %651 = vmatmul.bf16.gmra.mxu0 %v628
        %v652 = vpop.f32.mrf.mxu0
        %v653 = vadd.f32 0.0, %v652
        %v654 = vpop.f32.mrf.mxu0
        %655 = vdwg.mxu0
        %656 = vmatpush.bf16.msra.mxu0 0
        %657 = vmatpush.bf16.msra.mxu0 0
        %658 = vmatpush.bf16.msra.mxu0 0
        %659 = vmatpush.bf16.msra.mxu0 0
        %660 = vmatpush.bf16.msra.mxu0 0
        %661 = vmatpush.bf16.msra.mxu0 0
        %662 = vmatpush.bf16.msra.mxu0 %v532
        %663 = vmatpush.bf16.msra.mxu0 %v500
        %664 = vmatmul.bf16.gmra.mxu0 %v628
        %v665 = vpop.f32.mrf.mxu0
        %v666 = vadd.f32 0.0, %v665
        %v667 = vpop.f32.mrf.mxu0
        %668 = vdwg.mxu0
        %669 = vmatpush.bf16.msra.mxu0 0
        %670 = vmatpush.bf16.msra.mxu0 0
        %671 = vmatpush.bf16.msra.mxu0 0
        %672 = vmatpush.bf16.msra.mxu0 0
        %673 = vmatpush.bf16.msra.mxu0 0
        %674 = vmatpush.bf16.msra.mxu0 0
        %675 = vmatpush.bf16.msra.mxu0 %v533
        %676 = vmatpush.bf16.msra.mxu0 %v501
        %677 = vmatmul.bf16.gmra.mxu0 %v628
        %v678 = vpop.f32.mrf.mxu0
        %v679 = vadd.f32 0.0, %v678
        %v680 = vpop.f32.mrf.mxu0
        %681 = vdwg.mxu0
        %682 = vmatpush.bf16.msra.mxu0 0
        %683 = vmatpush.bf16.msra.mxu0 0
        %684 = vmatpush.bf16.msra.mxu0 0
        %685 = vmatpush.bf16.msra.mxu0 0
        %686 = vmatpush.bf16.msra.mxu0 0
        %687 = vmatpush.bf16.msra.mxu0 0
        %688 = vmatpush.bf16.msra.mxu0 %v534
        %689 = vmatpush.bf16.msra.mxu0 %v502
        %690 = vmatmul.bf16.gmra.mxu0 %v628
        %v691 = vpop.f32.mrf.mxu0
        %v692 = vadd.f32 0.0, %v691
        %v693 = vpop.f32.mrf.mxu0
        %694 = vdwg.mxu0
        %695 = vmatpush.bf16.msra.mxu0 0
        %696 = vmatpush.bf16.msra.mxu0 0
        %697 = vmatpush.bf16.msra.mxu0 0
        %698 = vmatpush.bf16.msra.mxu0 0
        %699 = vmatpush.bf16.msra.mxu0 0
        %700 = vmatpush.bf16.msra.mxu0 0
        %701 = vmatpush.bf16.msra.mxu0 %v535
        %702 = vmatpush.bf16.msra.mxu0 %v503
        %703 = vmatmul.bf16.gmra.mxu0 %v628
        %v704 = vpop.f32.mrf.mxu0
        %v705 = vadd.f32 0.0, %v704
        %v706 = vpop.f32.mrf.mxu0
        %707 = vdwg.mxu0
        %708 = vmatpush.bf16.msra.mxu0 0
        %709 = vmatpush.bf16.msra.mxu0 0
        %710 = vmatpush.bf16.msra.mxu0 0
        %711 = vmatpush.bf16.msra.mxu0 0
        %712 = vmatpush.bf16.msra.mxu0 0
        %713 = vmatpush.bf16.msra.mxu0 0
        %714 = vmatpush.bf16.msra.mxu0 %v536
        %715 = vmatpush.bf16.msra.mxu0 %v504
        %716 = vmatmul.bf16.gmra.mxu0 %v628
        %v717 = vpop.f32.mrf.mxu0
        %v718 = vadd.f32 0.0, %v717
        %v719 = vpop.f32.mrf.mxu0
        %720 = vdwg.mxu0
        %721 = vmatpush.bf16.msra.mxu0 0
        %722 = vmatpush.bf16.msra.mxu0 0
        %723 = vmatpush.bf16.msra.mxu0 0
        %724 = vmatpush.bf16.msra.mxu0 0
        %725 = vmatpush.bf16.msra.mxu0 0
        %726 = vmatpush.bf16.msra.mxu0 0
        %727 = vmatpush.bf16.msra.mxu0 %v537
        %728 = vmatpush.bf16.msra.mxu0 %v505
        %729 = vmatmul.bf16.gmra.mxu0 %v628
        %v730 = vpop.f32.mrf.mxu0
        %v731 = vadd.f32 0.0, %v730
        %v732 = vpop.f32.mrf.mxu0
        %733 = vdwg.mxu0
        %734 = vmatpush.bf16.msra.mxu0 0
        %735 = vmatpush.bf16.msra.mxu0 0
        %736 = vmatpush.bf16.msra.mxu0 0
        %737 = vmatpush.bf16.msra.mxu0 0
        %738 = vmatpush.bf16.msra.mxu0 0
        %739 = vmatpush.bf16.msra.mxu0 0
        %740 = vmatpush.bf16.msra.mxu0 %v538
        %741 = vmatpush.bf16.msra.mxu0 %v506
        %742 = vmatmul.bf16.gmra.mxu0 %v628
        %v743 = vpop.f32.mrf.mxu0
        %v744 = vadd.f32 0.0, %v743
        %v745 = vpop.f32.mrf.mxu0
        %746 = vdwg.mxu0
        %747 = vmatpush.bf16.msra.mxu0 0
        %748 = vmatpush.bf16.msra.mxu0 0
        %749 = vmatpush.bf16.msra.mxu0 0
        %750 = vmatpush.bf16.msra.mxu0 0
        %751 = vmatpush.bf16.msra.mxu0 0
        %752 = vmatpush.bf16.msra.mxu0 0
        %753 = vmatpush.bf16.msra.mxu0 %v539
        %754 = vmatpush.bf16.msra.mxu0 %v507
        %755 = vmatmul.bf16.gmra.mxu0 %v628
        %v756 = vpop.f32.mrf.mxu0
        %v757 = vadd.f32 0.0, %v756
        %v758 = vpop.f32.mrf.mxu0
        %759 = vdwg.mxu0
        %760 = vmatpush.bf16.msra.mxu0 0
        %761 = vmatpush.bf16.msra.mxu0 0
        %762 = vmatpush.bf16.msra.mxu0 0
        %763 = vmatpush.bf16.msra.mxu0 0
        %764 = vmatpush.bf16.msra.mxu0 0
        %765 = vmatpush.bf16.msra.mxu0 0
        %766 = vmatpush.bf16.msra.mxu0 %v540
        %767 = vmatpush.bf16.msra.mxu0 %v508
        %768 = vmatmul.bf16.gmra.mxu0 %v628
        %v769 = vpop.f32.mrf.mxu0
        %v770 = vadd.f32 0.0, %v769
        %v771 = vpop.f32.mrf.mxu0
        %772 = vdwg.mxu0
        %773 = vmatpush.bf16.msra.mxu0 0
        %774 = vmatpush.bf16.msra.mxu0 0
        %775 = vmatpush.bf16.msra.mxu0 0
        %776 = vmatpush.bf16.msra.mxu0 0
        %777 = vmatpush.bf16.msra.mxu0 0
        %778 = vmatpush.bf16.msra.mxu0 0
        %779 = vmatpush.bf16.msra.mxu0 %v541
        %780 = vmatpush.bf16.msra.mxu0 %v509
        %781 = vmatmul.bf16.gmra.mxu0 %v628
        %v782 = vpop.f32.mrf.mxu0
        %v783 = vadd.f32 0.0, %v782
        %v784 = vpop.f32.mrf.mxu0
        %785 = vdwg.mxu0
        %786 = vmatpush.bf16.msra.mxu0 0
        %787 = vmatpush.bf16.msra.mxu0 0
        %788 = vmatpush.bf16.msra.mxu0 0
        %789 = vmatpush.bf16.msra.mxu0 0
        %790 = vmatpush.bf16.msra.mxu0 0
        %791 = vmatpush.bf16.msra.mxu0 0
        %792 = vmatpush.bf16.msra.mxu0 %v542
        %793 = vmatpush.bf16.msra.mxu0 %v510
        %794 = vmatmul.bf16.gmra.mxu0 %v628
        %v795 = vpop.f32.mrf.mxu0
        %v796 = vadd.f32 0.0, %v795
        %v797 = vpop.f32.mrf.mxu0
        %798 = vdwg.mxu0
        %799 = vmatpush.bf16.msra.mxu0 0
        %800 = vmatpush.bf16.msra.mxu0 0
        %801 = vmatpush.bf16.msra.mxu0 0
        %802 = vmatpush.bf16.msra.mxu0 0
        %803 = vmatpush.bf16.msra.mxu0 0
        %804 = vmatpush.bf16.msra.mxu0 0
        %805 = vmatpush.bf16.msra.mxu0 %v543
        %806 = vmatpush.bf16.msra.mxu0 %v511
        %807 = vmatmul.bf16.gmra.mxu0 %v628
        %v808 = vpop.f32.mrf.mxu0
        %v809 = vadd.f32 0.0, %v808
        %v810 = vpop.f32.mrf.mxu0
        %811 = vdwg.mxu0
        %812 = vmatpush.bf16.msra.mxu0 0
        %813 = vmatpush.bf16.msra.mxu0 0
        %814 = vmatpush.bf16.msra.mxu0 0
        %815 = vmatpush.bf16.msra.mxu0 0
        %816 = vmatpush.bf16.msra.mxu0 0
        %817 = vmatpush.bf16.msra.mxu0 0
        %818 = vmatpush.bf16.msra.mxu0 %v544
        %819 = vmatpush.bf16.msra.mxu0 %v512
        %820 = vmatmul.bf16.gmra.mxu0 %v628
        %v821 = vpop.f32.mrf.mxu0
        %v822 = vadd.f32 0.0, %v821
        %v823 = vpop.f32.mrf.mxu0
        %824 = vdwg.mxu0
        %825 = vmatpush.bf16.msra.mxu0 0
        %826 = vmatpush.bf16.msra.mxu0 0
        %827 = vmatpush.bf16.msra.mxu0 0
        %828 = vmatpush.bf16.msra.mxu0 0
        %829 = vmatpush.bf16.msra.mxu0 0
        %830 = vmatpush.bf16.msra.mxu0 0
        %831 = vmatpush.bf16.msra.mxu0 %v545
        %832 = vmatpush.bf16.msra.mxu0 %v513
        %833 = vmatmul.bf16.gmra.mxu0 %v628
        %v834 = vpop.f32.mrf.mxu0
        %v835 = vadd.f32 0.0, %v834
        %v836 = vpop.f32.mrf.mxu0
        %837 = vdwg.mxu0
        %838 = vmatpush.bf16.msra.mxu0 0
        %839 = vmatpush.bf16.msra.mxu0 0
        %840 = vmatpush.bf16.msra.mxu0 0
        %841 = vmatpush.bf16.msra.mxu0 0
        %842 = vmatpush.bf16.msra.mxu0 0
        %843 = vmatpush.bf16.msra.mxu0 0
        %844 = vmatpush.bf16.msra.mxu0 %v546
        %845 = vmatpush.bf16.msra.mxu0 %v514
        %846 = vmatmul.bf16.gmra.mxu0 %v628
        %v847 = vpop.f32.mrf.mxu0
        %v848 = vadd.f32 0.0, %v847
        %v849 = vpop.f32.mrf.mxu0
        %850 = vdwg.mxu0
        %851 = vmatpush.bf16.msra.mxu0 0
        %852 = vmatpush.bf16.msra.mxu0 0
        %853 = vmatpush.bf16.msra.mxu0 0
        %854 = vmatpush.bf16.msra.mxu0 0
        %855 = vmatpush.bf16.msra.mxu0 0
        %856 = vmatpush.bf16.msra.mxu0 0
        %857 = vmatpush.bf16.msra.mxu0 %v547
        %858 = vmatpush.bf16.msra.mxu0 %v515
        %859 = vmatmul.bf16.gmra.mxu0 %v628
        %v860 = vpop.f32.mrf.mxu0
        %v861 = vadd.f32 0.0, %v860
        %v862 = vpop.f32.mrf.mxu0
        %863 = vdwg.mxu0
        %864 = vmatpush.bf16.msra.mxu0 0
        %865 = vmatpush.bf16.msra.mxu0 0
        %866 = vmatpush.bf16.msra.mxu0 0
        %867 = vmatpush.bf16.msra.mxu0 0
        %868 = vmatpush.bf16.msra.mxu0 0
        %869 = vmatpush.bf16.msra.mxu0 0
        %870 = vmatpush.bf16.msra.mxu0 %v548
        %871 = vmatpush.bf16.msra.mxu0 %v516
        %872 = vmatmul.bf16.gmra.mxu0 %v628
        %v873 = vpop.f32.mrf.mxu0
        %v874 = vadd.f32 0.0, %v873
        %v875 = vpop.f32.mrf.mxu0
        %876 = vdwg.mxu0
        %877 = vmatpush.bf16.msra.mxu0 0
        %878 = vmatpush.bf16.msra.mxu0 0
        %879 = vmatpush.bf16.msra.mxu0 0
        %880 = vmatpush.bf16.msra.mxu0 0
        %881 = vmatpush.bf16.msra.mxu0 0
        %882 = vmatpush.bf16.msra.mxu0 0
        %883 = vmatpush.bf16.msra.mxu0 %v549
        %884 = vmatpush.bf16.msra.mxu0 %v517
        %885 = vmatmul.bf16.gmra.mxu0 %v628
        %v886 = vpop.f32.mrf.mxu0
        %v887 = vadd.f32 0.0, %v886
        %v888 = vpop.f32.mrf.mxu0
        %889 = vdwg.mxu0
        %890 = vmatpush.bf16.msra.mxu0 0
        %891 = vmatpush.bf16.msra.mxu0 0
        %892 = vmatpush.bf16.msra.mxu0 0
        %893 = vmatpush.bf16.msra.mxu0 0
        %894 = vmatpush.bf16.msra.mxu0 0
        %895 = vmatpush.bf16.msra.mxu0 0
        %896 = vmatpush.bf16.msra.mxu0 %v550
        %897 = vmatpush.bf16.msra.mxu0 %v518
        %898 = vmatmul.bf16.gmra.mxu0 %v628
        %v899 = vpop.f32.mrf.mxu0
        %v900 = vadd.f32 0.0, %v899
        %v901 = vpop.f32.mrf.mxu0
        %902 = vdwg.mxu0
        %903 = vmatpush.bf16.msra.mxu0 0
        %904 = vmatpush.bf16.msra.mxu0 0
        %905 = vmatpush.bf16.msra.mxu0 0
        %906 = vmatpush.bf16.msra.mxu0 0
        %907 = vmatpush.bf16.msra.mxu0 0
        %908 = vmatpush.bf16.msra.mxu0 0
        %909 = vmatpush.bf16.msra.mxu0 %v551
        %910 = vmatpush.bf16.msra.mxu0 %v519
        %911 = vmatmul.bf16.gmra.mxu0 %v628
        %v912 = vpop.f32.mrf.mxu0
        %v913 = vadd.f32 0.0, %v912
        %v914 = vpop.f32.mrf.mxu0
        %915 = vdwg.mxu0
        %916 = vmatpush.bf16.msra.mxu0 0
        %917 = vmatpush.bf16.msra.mxu0 0
        %918 = vmatpush.bf16.msra.mxu0 0
        %919 = vmatpush.bf16.msra.mxu0 0
        %920 = vmatpush.bf16.msra.mxu0 0
        %921 = vmatpush.bf16.msra.mxu0 0
        %922 = vmatpush.bf16.msra.mxu0 %v552
        %923 = vmatpush.bf16.msra.mxu0 %v520
        %924 = vmatmul.bf16.gmra.mxu0 %v628
        %v925 = vpop.f32.mrf.mxu0
        %v926 = vadd.f32 0.0, %v925
        %v927 = vpop.f32.mrf.mxu0
        %928 = vdwg.mxu0
        %929 = vmatpush.bf16.msra.mxu0 0
        %930 = vmatpush.bf16.msra.mxu0 0
        %931 = vmatpush.bf16.msra.mxu0 0
        %932 = vmatpush.bf16.msra.mxu0 0
        %933 = vmatpush.bf16.msra.mxu0 0
        %934 = vmatpush.bf16.msra.mxu0 0
        %935 = vmatpush.bf16.msra.mxu0 %v553
        %936 = vmatpush.bf16.msra.mxu0 %v521
        %937 = vmatmul.bf16.gmra.mxu0 %v628
        %v938 = vpop.f32.mrf.mxu0
        %v939 = vadd.f32 0.0, %v938
        %v940 = vpop.f32.mrf.mxu0
        %941 = vdwg.mxu0
        %942 = vmatpush.bf16.msra.mxu0 0
        %943 = vmatpush.bf16.msra.mxu0 0
        %944 = vmatpush.bf16.msra.mxu0 0
        %945 = vmatpush.bf16.msra.mxu0 0
        %946 = vmatpush.bf16.msra.mxu0 0
        %947 = vmatpush.bf16.msra.mxu0 0
        %948 = vmatpush.bf16.msra.mxu0 %v554
        %949 = vmatpush.bf16.msra.mxu0 %v522
        %950 = vmatmul.bf16.gmra.mxu0 %v628
        %v951 = vpop.f32.mrf.mxu0
        %v952 = vadd.f32 0.0, %v951
        %v953 = vpop.f32.mrf.mxu0
        %954 = vdwg.mxu0
        %955 = vmatpush.bf16.msra.mxu0 0
        %956 = vmatpush.bf16.msra.mxu0 0
        %957 = vmatpush.bf16.msra.mxu0 0
        %958 = vmatpush.bf16.msra.mxu0 0
        %959 = vmatpush.bf16.msra.mxu0 0
        %960 = vmatpush.bf16.msra.mxu0 0
        %961 = vmatpush.bf16.msra.mxu0 %v555
        %962 = vmatpush.bf16.msra.mxu0 %v523
        %963 = vmatmul.bf16.gmra.mxu0 %v628
        %v964 = vpop.f32.mrf.mxu0
        %v965 = vadd.f32 0.0, %v964
        %v966 = vpop.f32.mrf.mxu0
        %967 = vdwg.mxu0
        %968 = vmatpush.bf16.msra.mxu0 0
        %969 = vmatpush.bf16.msra.mxu0 0
        %970 = vmatpush.bf16.msra.mxu0 0
        %971 = vmatpush.bf16.msra.mxu0 0
        %972 = vmatpush.bf16.msra.mxu0 0
        %973 = vmatpush.bf16.msra.mxu0 0
        %974 = vmatpush.bf16.msra.mxu0 %v556
        %975 = vmatpush.bf16.msra.mxu0 %v524
        %976 = vmatmul.bf16.gmra.mxu0 %v628
        %v977 = vpop.f32.mrf.mxu0
        %v978 = vadd.f32 0.0, %v977
        %v979 = vpop.f32.mrf.mxu0
        %980 = vdwg.mxu0
        %981 = vmatpush.bf16.msra.mxu0 0
        %982 = vmatpush.bf16.msra.mxu0 0
        %983 = vmatpush.bf16.msra.mxu0 0
        %984 = vmatpush.bf16.msra.mxu0 0
        %985 = vmatpush.bf16.msra.mxu0 0
        %986 = vmatpush.bf16.msra.mxu0 0
        %987 = vmatpush.bf16.msra.mxu0 %v557
        %988 = vmatpush.bf16.msra.mxu0 %v525
        %989 = vmatmul.bf16.gmra.mxu0 %v628
        %v990 = vpop.f32.mrf.mxu0
        %v991 = vadd.f32 0.0, %v990
        %v992 = vpop.f32.mrf.mxu0
        %993 = vdwg.mxu0
        %994 = vmatpush.bf16.msra.mxu0 0
        %995 = vmatpush.bf16.msra.mxu0 0
        %996 = vmatpush.bf16.msra.mxu0 0
        %997 = vmatpush.bf16.msra.mxu0 0
        %998 = vmatpush.bf16.msra.mxu0 0
        %999 = vmatpush.bf16.msra.mxu0 0
        %1000 = vmatpush.bf16.msra.mxu0 %v558
        %1001 = vmatpush.bf16.msra.mxu0 %v526
        %1002 = vmatmul.bf16.gmra.mxu0 %v628
        %v1003 = vpop.f32.mrf.mxu0
        %v1004 = vadd.f32 0.0, %v1003
        %v1005 = vpop.f32.mrf.mxu0
        %1006 = vdwg.mxu0
        %1007 = vmatpush.bf16.msra.mxu0 0
        %1008 = vmatpush.bf16.msra.mxu0 0
        %1009 = vmatpush.bf16.msra.mxu0 0
        %1010 = vmatpush.bf16.msra.mxu0 0
        %1011 = vmatpush.bf16.msra.mxu0 0
        %1012 = vmatpush.bf16.msra.mxu0 0
        %1013 = vmatpush.bf16.msra.mxu0 %v559
        %1014 = vmatpush.bf16.msra.mxu0 %v527
        %1015 = vmatmul.bf16.gmra.mxu0 %v628
        %v1016 = vpop.f32.mrf.mxu0
        %v1017 = vadd.f32 0.0, %v1016
        %v1018 = vpop.f32.mrf.mxu0
        %1019 = vdwg.mxu0
        %1020 = vmatpush.bf16.msra.mxu0 0
        %1021 = vmatpush.bf16.msra.mxu0 0
        %1022 = vmatpush.bf16.msra.mxu0 0
        %1023 = vmatpush.bf16.msra.mxu0 0
        %1024 = vmatpush.bf16.msra.mxu0 0
        %1025 = vmatpush.bf16.msra.mxu0 0
        %1026 = vmatpush.bf16.msra.mxu0 %v560
        %1027 = vmatpush.bf16.msra.mxu0 %v528
        %1028 = vmatmul.bf16.gmra.mxu0 %v628
        %v1029 = vpop.f32.mrf.mxu0
        %v1030 = vadd.f32 0.0, %v1029
        %v1031 = vpop.f32.mrf.mxu0
        %1032 = vdwg.mxu0
        %1033 = vmatpush.bf16.msra.mxu0 0
        %1034 = vmatpush.bf16.msra.mxu0 0
        %1035 = vmatpush.bf16.msra.mxu0 0
        %1036 = vmatpush.bf16.msra.mxu0 0
        %1037 = vmatpush.bf16.msra.mxu0 0
        %1038 = vmatpush.bf16.msra.mxu0 0
        %1039 = vmatpush.bf16.msra.mxu0 %v561
        %1040 = vmatpush.bf16.msra.mxu0 %v529
        %1041 = vmatmul.bf16.gmra.mxu0 %v628
        %v1042 = vpop.f32.mrf.mxu0
        %v1043 = vadd.f32 0.0, %v1042
        %v1044 = vpop.f32.mrf.mxu0
        %1045 = vdwg.mxu0
        %v1046 = vpack.c.bf16 %v640, %v640
        %1047 = vst [vmem:[#allocation2] sm:$0xf] %v1046
        %v1048 = vpack.c.bf16 %v653, %v653
        %1049 = vst [vmem:[#allocation2 + $0x4] sm:$0xf] %v1048
        %v1050 = vpack.c.bf16 %v666, %v666
        %1051 = vst [vmem:[#allocation2 + $0x8] sm:$0xf] %v1050
        %v1052 = vpack.c.bf16 %v679, %v679
        %1053 = vst [vmem:[#allocation2 + $0xc] sm:$0xf] %v1052
        %v1054 = vpack.c.bf16 %v692, %v692
        %1055 = vst [vmem:[#allocation2 + $0x10] sm:$0xf] %v1054
        %v1056 = vpack.c.bf16 %v705, %v705
        %1057 = vst [vmem:[#allocation2 + $0x14] sm:$0xf] %v1056
        %v1058 = vpack.c.bf16 %v718, %v718
        %1059 = vst [vmem:[#allocation2 + $0x18] sm:$0xf] %v1058
        %v1060 = vpack.c.bf16 %v731, %v731
        %1061 = vst [vmem:[#allocation2 + $0x1c] sm:$0xf] %v1060
        %v1062 = vpack.c.bf16 %v744, %v744
        %1063 = vst [vmem:[#allocation2 + $0x20] sm:$0xf] %v1062
        %v1064 = vpack.c.bf16 %v757, %v757
        %1065 = vst [vmem:[#allocation2 + $0x24] sm:$0xf] %v1064
        %v1066 = vpack.c.bf16 %v770, %v770
        %1067 = vst [vmem:[#allocation2 + $0x28] sm:$0xf] %v1066
        %v1068 = vpack.c.bf16 %v783, %v783
        %1069 = vst [vmem:[#allocation2 + $0x2c] sm:$0xf] %v1068
        %v1070 = vpack.c.bf16 %v796, %v796
        %1071 = vst [vmem:[#allocation2 + $0x30] sm:$0xf] %v1070
        %v1072 = vpack.c.bf16 %v809, %v809
        %1073 = vst [vmem:[#allocation2 + $0x34] sm:$0xf] %v1072
        %v1074 = vpack.c.bf16 %v822, %v822
        %1075 = vst [vmem:[#allocation2 + $0x38] sm:$0xf] %v1074
        %v1076 = vpack.c.bf16 %v835, %v835
        %1077 = vst [vmem:[#allocation2 + $0x3c] sm:$0xf] %v1076
        %v1078 = vpack.c.bf16 %v848, %v848
        %1079 = vst [vmem:[#allocation2 + $0x40] sm:$0xf] %v1078
        %v1080 = vpack.c.bf16 %v861, %v861
        %1081 = vst [vmem:[#allocation2 + $0x44] sm:$0xf] %v1080
        %v1082 = vpack.c.bf16 %v874, %v874
        %1083 = vst [vmem:[#allocation2 + $0x48] sm:$0xf] %v1082
        %v1084 = vpack.c.bf16 %v887, %v887
        %1085 = vst [vmem:[#allocation2 + $0x4c] sm:$0xf] %v1084
        %v1086 = vpack.c.bf16 %v900, %v900
        %1087 = vst [vmem:[#allocation2 + $0x50] sm:$0xf] %v1086
        %v1088 = vpack.c.bf16 %v913, %v913
        %1089 = vst [vmem:[#allocation2 + $0x54] sm:$0xf] %v1088
        %v1090 = vpack.c.bf16 %v926, %v926
        %1091 = vst [vmem:[#allocation2 + $0x58] sm:$0xf] %v1090
        %v1092 = vpack.c.bf16 %v939, %v939
        %1093 = vst [vmem:[#allocation2 + $0x5c] sm:$0xf] %v1092
        %v1094 = vpack.c.bf16 %v952, %v952
        %1095 = vst [vmem:[#allocation2 + $0x60] sm:$0xf] %v1094
        %v1096 = vpack.c.bf16 %v965, %v965
        %1097 = vst [vmem:[#allocation2 + $0x64] sm:$0xf] %v1096
        %v1098 = vpack.c.bf16 %v978, %v978
        %1099 = vst [vmem:[#allocation2 + $0x68] sm:$0xf] %v1098
        %v1100 = vpack.c.bf16 %v991, %v991
        %1101 = vst [vmem:[#allocation2 + $0x6c] sm:$0xf] %v1100
        %v1102 = vpack.c.bf16 %v1004, %v1004
        %1103 = vst [vmem:[#allocation2 + $0x70] sm:$0xf] %v1102
        %v1104 = vpack.c.bf16 %v1017, %v1017
        %1105 = vst [vmem:[#allocation2 + $0x74] sm:$0xf] %v1104
        %v1106 = vpack.c.bf16 %v1030, %v1030
        %1107 = vst [vmem:[#allocation2 + $0x78] sm:$0xf] %v1106
        %v1108 = vpack.c.bf16 %v1043, %v1043
        %1109 = vst [vmem:[#allocation2 + $0x7c] sm:$0xf] %v1108
        %v1110 = vld [vmem:[%s1] sm:$0xff]
        %v1111 = vld [vmem:[%s1 + $0x8] sm:$0xff]
        %v1112 = vld [vmem:[#allocation2] sm:$0xf]
        %v1113 = vld [vmem:[#allocation2 + $0x4] sm:$0xf]
        %v1114 = vld [vmem:[#allocation2 + $0x8] sm:$0xf]
        %v1115 = vld [vmem:[#allocation2 + $0xc] sm:$0xf]
        %v1116 = vld [vmem:[#allocation2 + $0x10] sm:$0xf]
        %v1117 = vld [vmem:[#allocation2 + $0x14] sm:$0xf]
        %v1118 = vld [vmem:[#allocation2 + $0x18] sm:$0xf]
        %v1119 = vld [vmem:[#allocation2 + $0x1c] sm:$0xf]
        %v1120 = vld [vmem:[#allocation2 + $0x20] sm:$0xf]
        %v1121 = vld [vmem:[#allocation2 + $0x24] sm:$0xf]
        %v1122 = vld [vmem:[#allocation2 + $0x28] sm:$0xf]
        %v1123 = vld [vmem:[#allocation2 + $0x2c] sm:$0xf]
        %v1124 = vld [vmem:[#allocation2 + $0x30] sm:$0xf]
        %v1125 = vld [vmem:[#allocation2 + $0x34] sm:$0xf]
        %v1126 = vld [vmem:[#allocation2 + $0x38] sm:$0xf]
        %v1127 = vld [vmem:[#allocation2 + $0x3c] sm:$0xf]
        %v1128 = vld [vmem:[#allocation2 + $0x40] sm:$0xf]
        %v1129 = vld [vmem:[#allocation2 + $0x44] sm:$0xf]
        %v1130 = vld [vmem:[#allocation2 + $0x48] sm:$0xf]
        %v1131 = vld [vmem:[#allocation2 + $0x4c] sm:$0xf]
        %v1132 = vld [vmem:[#allocation2 + $0x50] sm:$0xf]
        %v1133 = vld [vmem:[#allocation2 + $0x54] sm:$0xf]
        %v1134 = vld [vmem:[#allocation2 + $0x58] sm:$0xf]
        %v1135 = vld [vmem:[#allocation2 + $0x5c] sm:$0xf]
        %v1136 = vld [vmem:[#allocation2 + $0x60] sm:$0xf]
        %v1137 = vld [vmem:[#allocation2 + $0x64] sm:$0xf]
        %v1138 = vld [vmem:[#allocation2 + $0x68] sm:$0xf]
        %v1139 = vld [vmem:[#allocation2 + $0x6c] sm:$0xf]
        %v1140 = vld [vmem:[#allocation2 + $0x70] sm:$0xf]
        %v1141 = vld [vmem:[#allocation2 + $0x74] sm:$0xf]
        %v1142 = vld [vmem:[#allocation2 + $0x78] sm:$0xf]
        %v1143 = vld [vmem:[#allocation2 + $0x7c] sm:$0xf]
        %v1144 = vld [vmem:[%s4] sm:$0x1]
        %v1146 = vperm.slane %v1144, 0
        %v1150 = vunpack.c.l.b16 %v1110
        %v1151 = vunpack.c.h.b16 %v1110
        %v1152 = vunpack.c.l.b16 %v1111
        %v1153 = vunpack.c.h.b16 %v1111
        %v1154 = vpack.c.b16 %v1152, %v1150
        %v1155 = vpack.c.b16 %v1153, %v1151
        %v1190 = vunpack.c.l.b16 %v1112
        %v1191 = vunpack.c.l.b16 %v1113
        %v1192 = vunpack.c.l.b16 %v1114
        %v1193 = vunpack.c.l.b16 %v1115
        %v1194 = vunpack.c.l.b16 %v1116
        %v1195 = vunpack.c.l.b16 %v1117
        %v1196 = vunpack.c.l.b16 %v1118
        %v1197 = vunpack.c.l.b16 %v1119
        %v1198 = vunpack.c.l.b16 %v1120
        %v1199 = vunpack.c.l.b16 %v1121
        %v1200 = vunpack.c.l.b16 %v1122
        %v1201 = vunpack.c.l.b16 %v1123
        %v1202 = vunpack.c.l.b16 %v1124
        %v1203 = vunpack.c.l.b16 %v1125
        %v1204 = vunpack.c.l.b16 %v1126
        %v1205 = vunpack.c.l.b16 %v1127
        %v1206 = vunpack.c.l.b16 %v1128
        %v1207 = vunpack.c.l.b16 %v1129
        %v1208 = vunpack.c.l.b16 %v1130
        %v1209 = vunpack.c.l.b16 %v1131
        %v1210 = vunpack.c.l.b16 %v1132
        %v1211 = vunpack.c.l.b16 %v1133
        %v1212 = vunpack.c.l.b16 %v1134
        %v1213 = vunpack.c.l.b16 %v1135
        %v1214 = vunpack.c.l.b16 %v1136
        %v1215 = vunpack.c.l.b16 %v1137
        %v1216 = vunpack.c.l.b16 %v1138
        %v1217 = vunpack.c.l.b16 %v1139
        %v1218 = vunpack.c.l.b16 %v1140
        %v1219 = vunpack.c.l.b16 %v1141
        %v1220 = vunpack.c.l.b16 %v1142
        %v1221 = vunpack.c.l.b16 %v1143
        %v1222 = vpack.c.b16 %v1191, %v1190
        %v1223 = vpack.c.b16 %v1193, %v1192
        %v1224 = vpack.c.b16 %v1195, %v1194
        %v1225 = vpack.c.b16 %v1197, %v1196
        %v1226 = vpack.c.b16 %v1199, %v1198
        %v1227 = vpack.c.b16 %v1201, %v1200
        %v1228 = vpack.c.b16 %v1203, %v1202
        %v1229 = vpack.c.b16 %v1205, %v1204
        %v1230 = vpack.c.b16 %v1207, %v1206
        %v1231 = vpack.c.b16 %v1209, %v1208
        %v1232 = vpack.c.b16 %v1211, %v1210
        %v1233 = vpack.c.b16 %v1213, %v1212
        %v1234 = vpack.c.b16 %v1215, %v1214
        %v1235 = vpack.c.b16 %v1217, %v1216
        %v1236 = vpack.c.b16 %v1219, %v1218
        %v1237 = vpack.c.b16 %v1221, %v1220
        %1254 = vmatpush.bf16.msra.mxu0 %v1229
        %1255 = vmatpush.bf16.msra.mxu0 %v1228
        %1256 = vmatpush.bf16.msra.mxu0 %v1227
        %1257 = vmatpush.bf16.msra.mxu0 %v1226
        %1258 = vmatpush.bf16.msra.mxu0 %v1225
        %1259 = vmatpush.bf16.msra.mxu0 %v1224
        %1260 = vmatpush.bf16.msra.mxu0 %v1223
        %1261 = vmatpush.bf16.msra.mxu0 %v1222
        %1262 = vmatmul.bf16.gmra.mxu0 %v1154
        %v1263 = vpop.f32.mrf.mxu0
        %v1264 = vadd.f32 %v1146, %v1263
        %v1265 = vpop.f32.mrf.mxu0
        %v1266 = vadd.f32 %v1146, %v1265
        %1267 = vdwg.mxu0
        %1268 = vmatpush.bf16.msra.mxu0 %v1237
        %1269 = vmatpush.bf16.msra.mxu0 %v1236
        %1270 = vmatpush.bf16.msra.mxu0 %v1235
        %1271 = vmatpush.bf16.msra.mxu0 %v1234
        %1272 = vmatpush.bf16.msra.mxu0 %v1233
        %1273 = vmatpush.bf16.msra.mxu0 %v1232
        %1274 = vmatpush.bf16.msra.mxu0 %v1231
        %1275 = vmatpush.bf16.msra.mxu0 %v1230
        %1276 = vmatmul.bf16.gmra.mxu0 %v1155
        %v1277 = vpop.f32.mrf.mxu0
        %v1278 = vadd.f32 %v1264, %v1277
        %v1279 = vpop.f32.mrf.mxu0
        %v1280 = vadd.f32 %v1266, %v1279
        %1281 = vdwg.mxu0
        %v1282 = vld [vmem:[%s239] sm:$0xff]
        %v1283 = vld [vmem:[%s239 + $0x8] sm:$0xff]
        %v1284 = vadd.f32 %v1282, 0.001
        %v1285 = vadd.f32 %v1283, 0.001
        %v1286 = vrcp.pop %v1284
        %v1287 = vrcp.pop %v1285
        %1289 = vset.pattern.permute.xlu0 0
        %1290 = vperm.xlu0 %1289, %v1286
        %v1291 = vpop.permute.xlu0 %1290
        %1294 = vset.pattern.permute.xlu0 0
        %1295 = vperm.xlu0 %1294, %v1287
        %v1296 = vpop.permute.xlu0 %1295
        %v1298 = vmul.f32 %v1278, %v1291
        %v1299 = vmul.f32 %v1280, %v1296
        %1300 = vst [vmem:[%s230] sm:$0xff] %v1298
        %1301 = vst [vmem:[%s230 + $0x8] sm:$0xff] %v1299
        %s1302 = sand.u32 %s142, 1
        %s1303 = scalar_lea.sflag [#allocation4], %s1302
        %s1304 = sand.u32 %s142, 1
        %s1305 = smul.addr %s1304, 16
        %s1306 = scalar_lea.vmem [#allocation3], %s1305
        // Predicated region
        $region41: #{outer_product_mean.5} parent=39 // pred_check
          %p1307 = pneg %p152
        $region42: #{outer_product_mean.5} parent=39 // pred_check_branch
          %1309 = sbr.rel (%p1307) target = $region44
        $region43: #{outer_product_mean.5} parent=39 // pred_region
          %1311 = vsyncadd %s1303, 0
          %s1312 = smul.addr %s19, 2
          %s1313 = smul.addr %s1312, 8
          %s1314 = scalar_lea.hbm %s5, %s1313
          %s1315 = sshll.u32 %s1306, 4
          %s1316 = int_to_ptr.vmem [resolvable:$true] %s1315
          %s1317 = sshll.u32 %s1314, 4
          %s1318 = int_to_ptr.hbm [resolvable:$true] %s1317
          %1323 = dma.vmem_to_hbm [thread:$0]  %s1316, 256, %s1318, %s1303, 128, 128, 8
        $region44: #{outer_product_mean.5} parent=39 // pred_fallthru
          _
      $region40: #{outer_product_mean.5} parent=5 // pred_fallthru
        _
      %p1324 = scmp.le.s32.totalorder 2, %s14
      // Predicated region
      $region45: #{outer_product_mean.5} parent=5 // pred_check
        %p1325 = pneg %p1324
      $region46: #{outer_product_mean.5} parent=5 // pred_check_branch
        %1327 = sbr.rel (%p1325) target = $region48
      $region47: #{outer_product_mean.5} parent=5 // pred_region
        %s1328 = ssub.s32 %s14, 2
        // Predicated region
        $region49: #{outer_product_mean.5} parent=47 // pred_check
          %p1329 = pneg %p158
        $region50: #{outer_product_mean.5} parent=47 // pred_check_branch
          %1331 = sbr.rel (%p1329) target = $region52
        $region51: #{outer_product_mean.5} parent=47 // pred_region
          %s1332 = sand.u32 %s143, 1
          %s1333 = scalar_lea.sflag [#allocation4], %s1332
          %s1334 = sand.u32 %s143, 1
          %s1335 = smul.addr %s1334, 16
          %s1336 = scalar_lea.vmem [#allocation3], %s1335
          %1338 = dma.done %s1333, 256
        $region52: #{outer_product_mean.5} parent=47 // pred_fallthru
          _
      $region48: #{outer_product_mean.5} parent=5 // pred_fallthru
        _
    $region6: #{outer_product_mean.5} parent=1 // loop_footer
      %s18 = sadd.s32 1, %s14
    $region7: #{outer_product_mean.5} parent=1 // loop_footer_branch
      %13 = sbr.rel target = $region3
    $region8: #{outer_product_mean.5} parent=1 // loop_exit
      _
    %1339 = vsyncpa [#allocation4], 1
    %s1340 = scalar_lea.sflag [#allocation4], 1
    %1341 = vsyncpa %s1340, 1

</llo_original>
